<compile_context>
chip_gen: v7x
topology: tpu7x:2x2x1
jax: 0.10.0
libtpu: 0.0.40
codegen_flags: <defaults>
</compile_context>

<pallas_src>
import jax
import jax.numpy as jnp
from jax.experimental import pallas as pl
from jax.experimental.pallas import tpu as pltpu

C = 16        # fixed by the module: Conv2d(16, 16, kernel_size=3)
KH = KW = 3


def _make_kernel(H, W):
    WC = W * C

    def kernel(xp_ref, m1_ref, b1_ref, m2_ref, b2_ref, o_ref, mid_ref):
        # xp_ref : (Bn, H+2, W*C) bf16   input slab, rows 0 / H+1 edge-replicated
        # m*_ref : (3, W*C, W*C) bf16    block-banded weights (col pad folded in)
        # b*_ref : (1, W*C) f32          bias tiled across W
        # o_ref  : (Bn, H, W*C) f32      lane-dense output slab
        # mid_ref: (Bn, H+2, W*C) bf16   scratch for the row-padded intermediate
        Bn = xp_ref.shape[0]

        def band_conv_relu(v_ref, m_ref, b_ref):
            # One 3x3 conv + bias + ReLU on the slab layout: 3 accumulated MXU
            # matmuls (one per ky-shifted row window), K = N = W*C, f32 acc.
            acc = None
            for ky in range(KH):
                a = v_ref[:, ky:ky + H, :].reshape(Bn * H, WC)
                t = jnp.dot(a, m_ref[ky], preferred_element_type=jnp.float32)
                acc = t if acc is None else acc + t
            return jnp.maximum(acc + b_ref[...], 0.0)        # (Bn*H, W*C) f32

        h1 = band_conv_relu(xp_ref, m1_ref, b1_ref)
        h1 = h1.reshape(Bn, H, WC).astype(jnp.bfloat16)

        # ReplicationPad2d(1): only the two halo rows are materialized (the
        # left/right pad is in the weights) -> full-lane, unmasked stores.
        mid_ref[:, 1:H + 1, :] = h1
        mid_ref[:, 0:1, :] = h1[:, 0:1, :]
        mid_ref[:, H + 1:H + 2, :] = h1[:, H - 1:H, :]

        y = band_conv_relu(mid_ref, m2_ref, b2_ref)
        o_ref[...] = y.reshape(Bn, H, WC).astype(o_ref.dtype)

    return kernel


def _banded_weights(w, W):
    """OIHW conv weight -> (3, W*C, W*C) block-banded matrices (bf16).

    M[ky, wi*C + ci, wo*C + co] = sum_{kx : clamp(wo + kx - 1, 0, W-1) == wi}
                                  w[co, ci, ky, kx]
    i.e. the left/right ReplicationPad2d(1) is folded into the band columns.
    """
    wo = jnp.arange(W)
    clamp_idx = jnp.clip(wo[None, :] + jnp.arange(KW)[:, None] - 1, 0, W - 1)
    sel = (jnp.arange(W)[None, :, None] == clamp_idx[:, None, :])
    sel = sel.astype(jnp.float32)                              # (kx, wi, wo)
    m = jnp.einsum("kiw,ocyk->yicwo", sel, w.astype(jnp.float32))
    return m.reshape(KH, W * C, W * C).astype(jnp.bfloat16)


def _per_image_vmem_bytes(H, W):
    in_b = (H + 2) * W * C * 2            # bf16 input slab
    out_b = H * W * C * 4                 # f32 output slab
    mid_b = (H + 2) * W * C * 2           # bf16 intermediate scratch
    tmp_b = 4 * H * W * C * 4             # f32 accumulators / operand copies
    return 2 * in_b + 2 * out_b + mid_b + tmp_b    # in/out double-buffered


def _weight_vmem_bytes(W):
    return 2 * (2 * KH * (W * C) * (W * C) * 2 + 2 * W * C * 4)


def _pick_block_n(N, H, W):
    """Largest per-step image count that fits a ~24 MiB VMEM working set."""
    budget = 24 * 2**20 - _weight_vmem_bytes(W)
    per_img = _per_image_vmem_bytes(H, W)
    bn = max(1, min(N, budget // per_img)) if budget > per_img else 1
    # v7x has 2 TensorCores/chip: keep >= 2 parallel grid steps when possible.
    # Single-TC v5e/v6e: never split the grid just for "core parallelism".
    try:
        kind = jax.devices()[0].device_kind.lower()
        if "v7" in kind or "7x" in kind:
            bn = min(bn, max(1, pl.cdiv(N, 2)))
    except Exception:
        pass
    return int(bn)


def hidden_conv_block(x_nchw, w1, b1, w2, b2, *, block_n=None):
    """Forward pass of FluidNet's convBank (_HiddenConvBlock).

    x_nchw: (N, 16, H, W) float32   (PyTorch NCHW)
    w1, w2: (16, 16, 3, 3) float32  (PyTorch OIHW conv weights)
    b1, b2: (16,) float32
    returns (N, 16, H, W) float32
    """
    N, Cin, H, W = x_nchw.shape
    assert Cin == C

    if block_n is None:
        block_n = _pick_block_n(N, H, W)
    n_blocks = pl.cdiv(N, block_n)
    n_pad = n_blocks * block_n

    # --- layout glue (pure XLA) ---------------------------------------------
    x = jnp.transpose(x_nchw, (0, 2, 3, 1))                          # NHWC
    xp = jnp.pad(x, ((0, 0), (1, 1), (0, 0), (0, 0)), mode="edge")   # row halo
    if n_pad != N:
        xp = jnp.pad(xp, ((0, n_pad - N), (0, 0), (0, 0), (0, 0)))
    xp = xp.reshape(n_pad, H + 2, W * C).astype(jnp.bfloat16)        # lane-dense

    m1 = _banded_weights(w1, W)
    m2 = _banded_weights(w2, W)
    b1r = jnp.tile(b1.astype(jnp.float32), W).reshape(1, W * C)
    b2r = jnp.tile(b2.astype(jnp.float32), W).reshape(1, W * C)

    vmem_needed = (block_n * _per_image_vmem_bytes(H, W)
                   + _weight_vmem_bytes(W) + (2 << 20))
    vmem_limit = int(min(max(vmem_needed, 16 * 2**20), 48 * 2**20))

    out = pl.pallas_call(
        _make_kernel(H, W),
        out_shape=jax.ShapeDtypeStruct((n_pad, H, W * C), jnp.float32),
        grid_spec=pltpu.PrefetchScalarGridSpec(
            num_scalar_prefetch=0,
            grid=(n_blocks,),
            in_specs=[
                pl.BlockSpec((block_n, H + 2, W * C), lambda n: (n, 0, 0)),
                pl.BlockSpec((KH, W * C, W * C), lambda n: (0, 0, 0)),
                pl.BlockSpec((1, W * C), lambda n: (0, 0)),
                pl.BlockSpec((KH, W * C, W * C), lambda n: (0, 0, 0)),
                pl.BlockSpec((1, W * C), lambda n: (0, 0)),
            ],
            out_specs=pl.BlockSpec((block_n, H, W * C), lambda n: (n, 0, 0)),
            scratch_shapes=[
                pltpu.VMEM((block_n, H + 2, W * C), jnp.bfloat16),
            ],
        ),
        compiler_params=pltpu.CompilerParams(
            dimension_semantics=("parallel",),
            vmem_limit_bytes=vmem_limit),
    )(xp, m1, b1r, m2, b2r)

    out = out[:N].reshape(N, H, W, C)
    return jnp.transpose(out, (0, 3, 1, 2))                          # back to NCHW


def _reference(x_nchw, w1, b1, w2, b2):
    # Pure-JAX f32 reference: edge pad + valid 3x3 conv + ReLU, twice.
    def step(v, w, b):
        vp = jnp.pad(v, ((0, 0), (0, 0), (1, 1), (1, 1)), mode="edge")
        y = jax.lax.conv_general_dilated(
            vp, w, window_strides=(1, 1), padding="VALID",
            dimension_numbers=("NCHW", "OIHW", "NCHW"))
        return jax.nn.relu(y + b.reshape(1, C, 1, 1))
    return step(step(x_nchw, w1, b1), w2, b2)


if __name__ == "__main__":
    key = jax.random.PRNGKey(0)
    kx, kw1, kb1, kw2, kb2 = jax.random.split(key, 5)

    N, H, W = 2, 16, 16
    x = jax.random.normal(kx, (N, C, H, W), dtype=jnp.float32)

    # Deterministic PyTorch-style init (uniform bound 1/sqrt(fan_in)).
    bound = 1.0 / (C * KH * KW) ** 0.5
    w1 = jax.random.uniform(kw1, (C, C, KH, KW), jnp.float32, -bound, bound)
    b1 = jax.random.uniform(kb1, (C,), jnp.float32, -bound, bound)
    w2 = jax.random.uniform(kw2, (C, C, KH, KW), jnp.float32, -bound, bound)
    b2 = jax.random.uniform(kb2, (C,), jnp.float32, -bound, bound)

    out = hidden_conv_block(x, w1, b1, w2, b2)
    out = jax.block_until_ready(out)

    ref = _reference(x, w1, b1, w2, b2)
    assert out.shape == (N, C, H, W)
    assert jnp.allclose(out, ref, rtol=1e-2, atol=1e-2), \
        float(jnp.max(jnp.abs(out - ref)))

    print("KERNEL_OK")
</pallas_src>

<mosaic_0001>
module attributes {stable_mosaic.version = 11 : i64} {
  func.func @kernel(%arg0: i32, %arg1: memref<2x18x256xbf16, #tpu.memory_space<vmem>>, %arg2: memref<3x256x256xbf16, #tpu.memory_space<vmem>>, %arg3: memref<1x256xf32, #tpu.memory_space<vmem>>, %arg4: memref<3x256x256xbf16, #tpu.memory_space<vmem>>, %arg5: memref<1x256xf32, #tpu.memory_space<vmem>>, %arg6: memref<2x16x256xf32, #tpu.memory_space<vmem>>, %arg7: memref<2x18x256xbf16, #tpu.memory_space<vmem>>) attributes {dimension_semantics = [#tpu.dimension_semantics<parallel>], iteration_bounds = array<i64: 1>, scalar_prefetch = 0 : i64, scratch_operands = 1 : i64, tpu.core_type = #tpu.core_type<tc>, window_params = [{transform_indices = @transform_0, window_bounds = array<i64: 2, 18, 256>}, {pipeline_mode = #tpu.pipeline_mode<synchronous>, transform_indices = @transform_1, window_bounds = array<i64: 3, 256, 256>}, {pipeline_mode = #tpu.pipeline_mode<synchronous>, transform_indices = @transform_2, window_bounds = array<i64: 1, 256>}, {pipeline_mode = #tpu.pipeline_mode<synchronous>, transform_indices = @transform_3, window_bounds = array<i64: 3, 256, 256>}, {pipeline_mode = #tpu.pipeline_mode<synchronous>, transform_indices = @transform_4, window_bounds = array<i64: 1, 256>}, {transform_indices = @transform_5, window_bounds = array<i64: 2, 16, 256>}]} {
    %c0 = arith.constant 0 : index
    %c0_0 = arith.constant 0 : index
    %c0_1 = arith.constant 0 : index
    %0 = vector.load %arg1[%c0, %c0_0, %c0_1] : memref<2x18x256xbf16, #tpu.memory_space<vmem>>, vector<2x16x256xbf16>
    %1 = vector.shape_cast %0 : vector<2x16x256xbf16> to vector<32x256xbf16>
    %c0_2 = arith.constant 0 : index
    %c0_3 = arith.constant 0 : index
    %c0_4 = arith.constant 0 : index
    %2 = vector.load %arg2[%c0_2, %c0_3, %c0_4] : memref<3x256x256xbf16, #tpu.memory_space<vmem>>, vector<1x256x256xbf16>
    %3 = vector.shape_cast %2 : vector<1x256x256xbf16> to vector<256x256xbf16>
    %cst = arith.constant dense<0.000000e+00> : vector<32x256xf32>
    %4 = tpu.matmul %1, %3, %cst {dimension_numbers = #tpu.dot_dimension_numbers<[1], [0], [0], [1], [0, 0, 1, 1], [], []>} : vector<32x256xbf16>, vector<256x256xbf16>, vector<32x256xf32> -> vector<32x256xf32>
    %c0_5 = arith.constant 0 : index
    %c1 = arith.constant 1 : index
    %c0_6 = arith.constant 0 : index
    %5 = vector.load %arg1[%c0_5, %c1, %c0_6] : memref<2x18x256xbf16, #tpu.memory_space<vmem>>, vector<2x16x256xbf16>
    %6 = vector.shape_cast %5 : vector<2x16x256xbf16> to vector<32x256xbf16>
    %c1_7 = arith.constant 1 : index
    %c0_8 = arith.constant 0 : index
    %c0_9 = arith.constant 0 : index
    %7 = vector.load %arg2[%c1_7, %c0_8, %c0_9] : memref<3x256x256xbf16, #tpu.memory_space<vmem>>, vector<1x256x256xbf16>
    %8 = vector.shape_cast %7 : vector<1x256x256xbf16> to vector<256x256xbf16>
    %cst_10 = arith.constant dense<0.000000e+00> : vector<32x256xf32>
    %9 = tpu.matmul %6, %8, %cst_10 {dimension_numbers = #tpu.dot_dimension_numbers<[1], [0], [0], [1], [0, 0, 1, 1], [], []>} : vector<32x256xbf16>, vector<256x256xbf16>, vector<32x256xf32> -> vector<32x256xf32>
    %10 = arith.addf %4, %9 : vector<32x256xf32>
    %c0_11 = arith.constant 0 : index
    %c2 = arith.constant 2 : index
    %c0_12 = arith.constant 0 : index
    %11 = vector.load %arg1[%c0_11, %c2, %c0_12] : memref<2x18x256xbf16, #tpu.memory_space<vmem>>, vector<2x16x256xbf16>
    %12 = vector.shape_cast %11 : vector<2x16x256xbf16> to vector<32x256xbf16>
    %c2_13 = arith.constant 2 : index
    %c0_14 = arith.constant 0 : index
    %c0_15 = arith.constant 0 : index
    %13 = vector.load %arg2[%c2_13, %c0_14, %c0_15] : memref<3x256x256xbf16, #tpu.memory_space<vmem>>, vector<1x256x256xbf16>
    %14 = vector.shape_cast %13 : vector<1x256x256xbf16> to vector<256x256xbf16>
    %cst_16 = arith.constant dense<0.000000e+00> : vector<32x256xf32>
    %15 = tpu.matmul %12, %14, %cst_16 {dimension_numbers = #tpu.dot_dimension_numbers<[1], [0], [0], [1], [0, 0, 1, 1], [], []>} : vector<32x256xbf16>, vector<256x256xbf16>, vector<32x256xf32> -> vector<32x256xf32>
    %16 = arith.addf %10, %15 : vector<32x256xf32>
    %c0_17 = arith.constant 0 : index
    %c0_18 = arith.constant 0 : index
    %17 = vector.load %arg3[%c0_17, %c0_18] : memref<1x256xf32, #tpu.memory_space<vmem>>, vector<1x256xf32>
    %18 = vector.broadcast %17 : vector<1x256xf32> to vector<32x256xf32>
    %19 = arith.addf %16, %18 : vector<32x256xf32>
    %cst_19 = arith.constant 0.000000e+00 : f32
    %20 = vector.broadcast %cst_19 : f32 to vector<32x256xf32>
    %21 = arith.maximumf %19, %20 : vector<32x256xf32>
    %22 = vector.shape_cast %21 : vector<32x256xf32> to vector<2x16x256xf32>
    %23 = arith.truncf %22 : vector<2x16x256xf32> to vector<2x16x256xbf16>
    %c0_20 = arith.constant 0 : index
    %c1_21 = arith.constant 1 : index
    %c0_22 = arith.constant 0 : index
    %24 = vector.load %arg7[%c0_20, %c1_21, %c0_22] : memref<2x18x256xbf16, #tpu.memory_space<vmem>>, vector<2x16x256xbf16>
    tpu.vector_store %arg7[%c0_20, %c1_21, %c0_22], %23 {strides = array<i32>} : memref<2x18x256xbf16, #tpu.memory_space<vmem>>, vector<2x16x256xbf16>,
    %25 = vector.extract_strided_slice %23 {offsets = [0, 0, 0], sizes = [2, 1, 256], strides = [1, 1, 1]} : vector<2x16x256xbf16> to vector<2x1x256xbf16>
    %c0_23 = arith.constant 0 : index
    %c0_24 = arith.constant 0 : index
    %c0_25 = arith.constant 0 : index
    %26 = vector.load %arg7[%c0_23, %c0_24, %c0_25] : memref<2x18x256xbf16, #tpu.memory_space<vmem>>, vector<2x1x256xbf16>
    tpu.vector_store %arg7[%c0_23, %c0_24, %c0_25], %25 {strides = array<i32>} : memref<2x18x256xbf16, #tpu.memory_space<vmem>>, vector<2x1x256xbf16>,
    %27 = vector.extract_strided_slice %23 {offsets = [0, 15, 0], sizes = [2, 1, 256], strides = [1, 1, 1]} : vector<2x16x256xbf16> to vector<2x1x256xbf16>
    %c0_26 = arith.constant 0 : index
    %c17 = arith.constant 17 : index
    %c0_27 = arith.constant 0 : index
    %28 = vector.load %arg7[%c0_26, %c17, %c0_27] : memref<2x18x256xbf16, #tpu.memory_space<vmem>>, vector<2x1x256xbf16>
    tpu.vector_store %arg7[%c0_26, %c17, %c0_27], %27 {strides = array<i32>} : memref<2x18x256xbf16, #tpu.memory_space<vmem>>, vector<2x1x256xbf16>,
    %c0_28 = arith.constant 0 : index
    %c0_29 = arith.constant 0 : index
    %c0_30 = arith.constant 0 : index
    %29 = vector.load %arg7[%c0_28, %c0_29, %c0_30] : memref<2x18x256xbf16, #tpu.memory_space<vmem>>, vector<2x16x256xbf16>
    %30 = vector.shape_cast %29 : vector<2x16x256xbf16> to vector<32x256xbf16>
    %c0_31 = arith.constant 0 : index
    %c0_32 = arith.constant 0 : index
    %c0_33 = arith.constant 0 : index
    %31 = vector.load %arg4[%c0_31, %c0_32, %c0_33] : memref<3x256x256xbf16, #tpu.memory_space<vmem>>, vector<1x256x256xbf16>
    %32 = vector.shape_cast %31 : vector<1x256x256xbf16> to vector<256x256xbf16>
    %cst_34 = arith.constant dense<0.000000e+00> : vector<32x256xf32>
    %33 = tpu.matmul %30, %32, %cst_34 {dimension_numbers = #tpu.dot_dimension_numbers<[1], [0], [0], [1], [0, 0, 1, 1], [], []>} : vector<32x256xbf16>, vector<256x256xbf16>, vector<32x256xf32> -> vector<32x256xf32>
    %c0_35 = arith.constant 0 : index
    %c1_36 = arith.constant 1 : index
    %c0_37 = arith.constant 0 : index
    %34 = vector.load %arg7[%c0_35, %c1_36, %c0_37] : memref<2x18x256xbf16, #tpu.memory_space<vmem>>, vector<2x16x256xbf16>
    %35 = vector.shape_cast %34 : vector<2x16x256xbf16> to vector<32x256xbf16>
    %c1_38 = arith.constant 1 : index
    %c0_39 = arith.constant 0 : index
    %c0_40 = arith.constant 0 : index
    %36 = vector.load %arg4[%c1_38, %c0_39, %c0_40] : memref<3x256x256xbf16, #tpu.memory_space<vmem>>, vector<1x256x256xbf16>
    %37 = vector.shape_cast %36 : vector<1x256x256xbf16> to vector<256x256xbf16>
    %cst_41 = arith.constant dense<0.000000e+00> : vector<32x256xf32>
    %38 = tpu.matmul %35, %37, %cst_41 {dimension_numbers = #tpu.dot_dimension_numbers<[1], [0], [0], [1], [0, 0, 1, 1], [], []>} : vector<32x256xbf16>, vector<256x256xbf16>, vector<32x256xf32> -> vector<32x256xf32>
    %39 = arith.addf %33, %38 : vector<32x256xf32>
    %c0_42 = arith.constant 0 : index
    %c2_43 = arith.constant 2 : index
    %c0_44 = arith.constant 0 : index
    %40 = vector.load %arg7[%c0_42, %c2_43, %c0_44] : memref<2x18x256xbf16, #tpu.memory_space<vmem>>, vector<2x16x256xbf16>
    %41 = vector.shape_cast %40 : vector<2x16x256xbf16> to vector<32x256xbf16>
    %c2_45 = arith.constant 2 : index
    %c0_46 = arith.constant 0 : index
    %c0_47 = arith.constant 0 : index
    %42 = vector.load %arg4[%c2_45, %c0_46, %c0_47] : memref<3x256x256xbf16, #tpu.memory_space<vmem>>, vector<1x256x256xbf16>
    %43 = vector.shape_cast %42 : vector<1x256x256xbf16> to vector<256x256xbf16>
    %cst_48 = arith.constant dense<0.000000e+00> : vector<32x256xf32>
    %44 = tpu.matmul %41, %43, %cst_48 {dimension_numbers = #tpu.dot_dimension_numbers<[1], [0], [0], [1], [0, 0, 1, 1], [], []>} : vector<32x256xbf16>, vector<256x256xbf16>, vector<32x256xf32> -> vector<32x256xf32>
    %45 = arith.addf %39, %44 : vector<32x256xf32>
    %c0_49 = arith.constant 0 : index
    %c0_50 = arith.constant 0 : index
    %46 = vector.load %arg5[%c0_49, %c0_50] : memref<1x256xf32, #tpu.memory_space<vmem>>, vector<1x256xf32>
    %47 = vector.broadcast %46 : vector<1x256xf32> to vector<32x256xf32>
    %48 = arith.addf %45, %47 : vector<32x256xf32>
    %cst_51 = arith.constant 0.000000e+00 : f32
    %49 = vector.broadcast %cst_51 : f32 to vector<32x256xf32>
    %50 = arith.maximumf %48, %49 : vector<32x256xf32>
    %51 = vector.shape_cast %50 : vector<32x256xf32> to vector<2x16x256xf32>
    %c0_52 = arith.constant 0 : index
    %c0_53 = arith.constant 0 : index
    %c0_54 = arith.constant 0 : index
    %52 = vector.load %arg6[%c0_52, %c0_53, %c0_54] : memref<2x16x256xf32, #tpu.memory_space<vmem>>, vector<2x16x256xf32>
    tpu.vector_store %arg6[%c0_52, %c0_53, %c0_54], %51 {strides = array<i32>} : memref<2x16x256xf32, #tpu.memory_space<vmem>>, vector<2x16x256xf32>,
    return
  }
  func.func @transform_0(%arg0: i32) -> (i32, i32, i32) {
    %c0_i32 = arith.constant 0 : i32
    %c0_i32_0 = arith.constant 0 : i32
    %c0_i32_1 = arith.constant 0 : i32
    return %arg0, %c0_i32, %c0_i32_0 : i32, i32, i32
  }
  func.func @transform_1(%arg0: i32) -> (i32, i32, i32) {
    %c0_i32 = arith.constant 0 : i32
    %c0_i32_0 = arith.constant 0 : i32
    %c0_i32_1 = arith.constant 0 : i32
    %c0_i32_2 = arith.constant 0 : i32
    return %c0_i32, %c0_i32_0, %c0_i32_1 : i32, i32, i32
  }
  func.func @transform_2(%arg0: i32) -> (i32, i32) {
    %c0_i32 = arith.constant 0 : i32
    %c0_i32_0 = arith.constant 0 : i32
    %c0_i32_1 = arith.constant 0 : i32
    return %c0_i32, %c0_i32_0 : i32, i32
  }
  func.func @transform_3(%arg0: i32) -> (i32, i32, i32) {
    %c0_i32 = arith.constant 0 : i32
    %c0_i32_0 = arith.constant 0 : i32
    %c0_i32_1 = arith.constant 0 : i32
    %c0_i32_2 = arith.constant 0 : i32
    return %c0_i32, %c0_i32_0, %c0_i32_1 : i32, i32, i32
  }
  func.func @transform_4(%arg0: i32) -> (i32, i32) {
    %c0_i32 = arith.constant 0 : i32
    %c0_i32_0 = arith.constant 0 : i32
    %c0_i32_1 = arith.constant 0 : i32
    return %c0_i32, %c0_i32_0 : i32, i32
  }
  func.func @transform_5(%arg0: i32) -> (i32, i32, i32) {
    %c0_i32 = arith.constant 0 : i32
    %c0_i32_0 = arith.constant 0 : i32
    %c0_i32_1 = arith.constant 0 : i32
    return %arg0, %c0_i32, %c0_i32_0 : i32, i32, i32
  }
}

</mosaic_0001>

<llo_original>
// kernel: tpu_custom_call.1
$region0: #{tpu_custom_call.1}
  #allocation0 [shape = 'u32[]', space=smem, size = 0x4, offset = 0x4, fixed_abs, tag = 'smem constant byte address 0x4 - core index']
  #allocation1 [shape = 'u32[144,128]{1,0:T(1,128)}', space=vmem, size = 0x12000, scoped, tag = 'internal scratch']
  #allocation2 [shape = 'bf16[2,18,256]{2,1,0:T(8,128)(2,1)}', space=vmem, size = 0x6000, scoped, tag = 'scratch operand']
  %s0 = inlined_call_operand.vmem [shape: bf16[2,18,256], index: 0, kind: input, shape index: {}]
  %s1 = inlined_call_operand.hbm [shape: bf16[3,256,256], index: 1, kind: input, shape index: {}]
  %s2 = inlined_call_operand.vmem [shape: f32[1,256], index: 2, kind: input, shape index: {}]
  %s3 = inlined_call_operand.hbm [shape: bf16[3,256,256], index: 3, kind: input, shape index: {}]
  %s4 = inlined_call_operand.vmem [shape: f32[1,256], index: 4, kind: input, shape index: {}]
  %s5 = inlined_call_operand.hbm [shape: f32[2,16,256], index: 5, kind: output, shape index: {}]
  %s6 = sld [smem:[#allocation0]]
  $region38: #{tpu_custom_call.1} parent=0
    _
  %s8 = ssub.s32 1, %s6
  %s9 = scalar_select 0, %s8, %s6
  $region1: #{tpu_custom_call.1} parent=0
    #allocation3 [shape = 'u8[393216]{0}', space=vmem, size = 0x60000, scoped, tag = 'input window, operand 1, single buffered']
    #allocation4 [shape = 's32[1]{0}', space=sflag, size = 0x4, scoped, tag = 'scoped memory for tpu_custom_call.1']
    #allocation5 [shape = 's32[1]{0}', space=sflag, size = 0x4, scoped, tag = 'scoped memory for tpu_custom_call.1']
    #allocation6 [shape = 'u8[393216]{0}', space=vmem, size = 0x60000, scoped, tag = 'input window, operand 3, single buffered']
    #allocation7 [shape = 's32[1]{0}', space=sflag, size = 0x4, scoped, tag = 'scoped memory for tpu_custom_call.1']
    #allocation8 [shape = 'u8[32768]{0}', space=vmem, size = 0x8000, scoped, tag = 'output window, operand 0, single buffered']
    %10 = vsyncpa [#allocation4], 0
    %11 = vsyncpa [#allocation7], 0
    %12 = vsyncpa [#allocation5], 0
    // Predicated region
    $region2: #{tpu_custom_call.1} parent=1 // pred_check
      _
    $region3: #{tpu_custom_call.1} parent=1 // pred_check_branch
      %14 = sbr.rel (0) target = $region5
    $region4: #{tpu_custom_call.1} parent=1 // pred_region
      _
    $region5: #{tpu_custom_call.1} parent=1 // pred_fallthru
      _
    // Predicated region
    $region6: #{tpu_custom_call.1} parent=1 // pred_check
      _
    $region7: #{tpu_custom_call.1} parent=1 // pred_check_branch
      %16 = sbr.rel (0) target = $region9
    $region8: #{tpu_custom_call.1} parent=1 // pred_region
      %s18 = ssub.s32 12288, 12288
      %19 = vsyncadd [#allocation4], %s18
      %s20 = sshll.u32 [#allocation3], 4
      %s21 = int_to_ptr.vmem [resolvable:$true] %s20
      %26 = dma.hbm_to_vmem [thread:$0]  %s1, 12288, %s21, [#allocation4], 128, 128, 8
    $region9: #{tpu_custom_call.1} parent=1 // pred_fallthru
      _
    // Predicated region
    $region10: #{tpu_custom_call.1} parent=1 // pred_check
      _
    $region11: #{tpu_custom_call.1} parent=1 // pred_check_branch
      %28 = sbr.rel (0) target = $region13
    $region12: #{tpu_custom_call.1} parent=1 // pred_region
      _
    $region13: #{tpu_custom_call.1} parent=1 // pred_fallthru
      _
    // Predicated region
    $region14: #{tpu_custom_call.1} parent=1 // pred_check
      _
    $region15: #{tpu_custom_call.1} parent=1 // pred_check_branch
      %30 = sbr.rel (0) target = $region17
    $region16: #{tpu_custom_call.1} parent=1 // pred_region
      %s32 = ssub.s32 12288, 12288
      %33 = vsyncadd [#allocation7], %s32
      %s34 = sshll.u32 [#allocation6], 4
      %s35 = int_to_ptr.vmem [resolvable:$true] %s34
      %40 = dma.hbm_to_vmem [thread:$0]  %s3, 12288, %s35, [#allocation7], 128, 128, 8
    $region17: #{tpu_custom_call.1} parent=1 // pred_fallthru
      _
    // Predicated region
    $region18: #{tpu_custom_call.1} parent=1 // pred_check
      _
    $region19: #{tpu_custom_call.1} parent=1 // pred_check_branch
      %42 = sbr.rel (0) target = $region21
    $region20: #{tpu_custom_call.1} parent=1 // pred_region
      _
    $region21: #{tpu_custom_call.1} parent=1 // pred_fallthru
      _
    // Predicated region
    $region22: #{tpu_custom_call.1} parent=1 // pred_check
      _
    $region23: #{tpu_custom_call.1} parent=1 // pred_check_branch
      %44 = sbr.rel (0) target = $region25
    $region24: #{tpu_custom_call.1} parent=1 // pred_region
      %45 = dma.done [#allocation4], 12288
    $region25: #{tpu_custom_call.1} parent=1 // pred_fallthru
      _
    // Predicated region
    $region26: #{tpu_custom_call.1} parent=1 // pred_check
      _
    $region27: #{tpu_custom_call.1} parent=1 // pred_check_branch
      %47 = sbr.rel (0) target = $region29
    $region28: #{tpu_custom_call.1} parent=1 // pred_region
      %48 = dma.done [#allocation7], 12288
    $region29: #{tpu_custom_call.1} parent=1 // pred_fallthru
      _
    %v49 = vld [vmem:[%s0] sm:$0xff]
    %v50 = vld [vmem:[%s0 + $0x8] sm:$0xff]
    %v51 = vld [vmem:[%s0 + $0x18] sm:$0xff]
    %v52 = vld [vmem:[%s0 + $0x20] sm:$0xff]
    %v53 = vld [vmem:[#allocation3] sm:$0xff]
    %v54 = vld [vmem:[#allocation3 + $0x8] sm:$0xff]
    %v55 = vld [vmem:[#allocation3 + $0x10] sm:$0xff]
    %v56 = vld [vmem:[#allocation3 + $0x18] sm:$0xff]
    %v57 = vld [vmem:[#allocation3 + $0x20] sm:$0xff]
    %v58 = vld [vmem:[#allocation3 + $0x28] sm:$0xff]
    %v59 = vld [vmem:[#allocation3 + $0x30] sm:$0xff]
    %v60 = vld [vmem:[#allocation3 + $0x38] sm:$0xff]
    %v61 = vld [vmem:[#allocation3 + $0x40] sm:$0xff]
    %v62 = vld [vmem:[#allocation3 + $0x48] sm:$0xff]
    %v63 = vld [vmem:[#allocation3 + $0x50] sm:$0xff]
    %v64 = vld [vmem:[#allocation3 + $0x58] sm:$0xff]
    %v65 = vld [vmem:[#allocation3 + $0x60] sm:$0xff]
    %v66 = vld [vmem:[#allocation3 + $0x68] sm:$0xff]
    %v67 = vld [vmem:[#allocation3 + $0x70] sm:$0xff]
    %v68 = vld [vmem:[#allocation3 + $0x78] sm:$0xff]
    %v69 = vld [vmem:[#allocation3 + $0x80] sm:$0xff]
    %v70 = vld [vmem:[#allocation3 + $0x88] sm:$0xff]
    %v71 = vld [vmem:[#allocation3 + $0x90] sm:$0xff]
    %v72 = vld [vmem:[#allocation3 + $0x98] sm:$0xff]
    %v73 = vld [vmem:[#allocation3 + $0xa0] sm:$0xff]
    %v74 = vld [vmem:[#allocation3 + $0xa8] sm:$0xff]
    %v75 = vld [vmem:[#allocation3 + $0xb0] sm:$0xff]
    %v76 = vld [vmem:[#allocation3 + $0xb8] sm:$0xff]
    %v77 = vld [vmem:[#allocation3 + $0xc0] sm:$0xff]
    %v78 = vld [vmem:[#allocation3 + $0xc8] sm:$0xff]
    %v79 = vld [vmem:[#allocation3 + $0xd0] sm:$0xff]
    %v80 = vld [vmem:[#allocation3 + $0xd8] sm:$0xff]
    %v81 = vld [vmem:[#allocation3 + $0xe0] sm:$0xff]
    %v82 = vld [vmem:[#allocation3 + $0xe8] sm:$0xff]
    %v83 = vld [vmem:[#allocation3 + $0xf0] sm:$0xff]
    %v84 = vld [vmem:[#allocation3 + $0xf8] sm:$0xff]
    %v85 = vld [vmem:[%s0 + $0x10] sm:$0x11]
    %v86 = vld [vmem:[%s0 + $0x28] sm:$0x11]
    %vm87 = vsmask.f32 3328
    %vm88 = vsmask.f32 7440
    %vm89 = vmor %vm87, %vm88
    %v91 = vshrl.u32 %v49, 16
    %v93 = vrot.slane %v91, 4
    %v94 = vshll.u32 %v49, 16
    %v96 = vrot.slane %v94, 5
    %v97 = vor.u32 %v93, %v96
    %v98 = vrot.slane %v97, 4
    %v100 = vshll.u32 %v50, 16
    %v102 = vrot.slane %v100, 5
    %v103 = vsel %vm89, %v98, %v102
    %v104 = vshrl.u32 %v50, 16
    %v106 = vrot.slane %v104, 4
    %v107 = vor.u32 %v106, %v102
    %v108 = vrot.slane %v107, 4
    %v110 = vshll.u32 %v85, 16
    %v112 = vrot.slane %v110, 5
    %v113 = vsel %vm89, %v108, %v112
    %v115 = vshrl.u32 %v51, 16
    %v117 = vrot.slane %v115, 4
    %v118 = vshll.u32 %v51, 16
    %v120 = vrot.slane %v118, 5
    %v121 = vor.u32 %v117, %v120
    %v122 = vrot.slane %v121, 4
    %v124 = vshll.u32 %v52, 16
    %v126 = vrot.slane %v124, 5
    %v127 = vsel %vm89, %v122, %v126
    %v128 = vshrl.u32 %v52, 16
    %v130 = vrot.slane %v128, 4
    %v131 = vor.u32 %v130, %v126
    %v132 = vrot.slane %v131, 4
    %v134 = vshll.u32 %v86, 16
    %v136 = vrot.slane %v134, 5
    %v137 = vsel %vm89, %v132, %v136
    %s138 = scalar_lea.vmem [#allocation3], 256
    %v139 = vld [vmem:[%s138] sm:$0xff]
    %v140 = vld [vmem:[%s138 + $0x8] sm:$0xff]
    %v141 = vld [vmem:[%s138 + $0x10] sm:$0xff]
    %v142 = vld [vmem:[%s138 + $0x18] sm:$0xff]
    %v143 = vld [vmem:[%s138 + $0x20] sm:$0xff]
    %v144 = vld [vmem:[%s138 + $0x28] sm:$0xff]
    %v145 = vld [vmem:[%s138 + $0x30] sm:$0xff]
    %v146 = vld [vmem:[%s138 + $0x38] sm:$0xff]
    %v147 = vld [vmem:[%s138 + $0x40] sm:$0xff]
    %v148 = vld [vmem:[%s138 + $0x48] sm:$0xff]
    %v149 = vld [vmem:[%s138 + $0x50] sm:$0xff]
    %v150 = vld [vmem:[%s138 + $0x58] sm:$0xff]
    %v151 = vld [vmem:[%s138 + $0x60] sm:$0xff]
    %v152 = vld [vmem:[%s138 + $0x68] sm:$0xff]
    %v153 = vld [vmem:[%s138 + $0x70] sm:$0xff]
    %v154 = vld [vmem:[%s138 + $0x78] sm:$0xff]
    %v155 = vld [vmem:[%s138 + $0x80] sm:$0xff]
    %v156 = vld [vmem:[%s138 + $0x88] sm:$0xff]
    %v157 = vld [vmem:[%s138 + $0x90] sm:$0xff]
    %v158 = vld [vmem:[%s138 + $0x98] sm:$0xff]
    %v159 = vld [vmem:[%s138 + $0xa0] sm:$0xff]
    %v160 = vld [vmem:[%s138 + $0xa8] sm:$0xff]
    %v161 = vld [vmem:[%s138 + $0xb0] sm:$0xff]
    %v162 = vld [vmem:[%s138 + $0xb8] sm:$0xff]
    %v163 = vld [vmem:[%s138 + $0xc0] sm:$0xff]
    %v164 = vld [vmem:[%s138 + $0xc8] sm:$0xff]
    %v165 = vld [vmem:[%s138 + $0xd0] sm:$0xff]
    %v166 = vld [vmem:[%s138 + $0xd8] sm:$0xff]
    %v167 = vld [vmem:[%s138 + $0xe0] sm:$0xff]
    %v168 = vld [vmem:[%s138 + $0xe8] sm:$0xff]
    %v169 = vld [vmem:[%s138 + $0xf0] sm:$0xff]
    %v170 = vld [vmem:[%s138 + $0xf8] sm:$0xff]
    %v171 = vunpack.c.l.b16 %v103
    %v172 = vunpack.c.h.b16 %v103
    %v173 = vunpack.c.l.b16 %v113
    %v174 = vunpack.c.h.b16 %v113
    %v175 = vunpack.c.l.b16 %v127
    %v176 = vunpack.c.h.b16 %v127
    %v177 = vunpack.c.l.b16 %v137
    %v178 = vunpack.c.h.b16 %v137
    %v179 = vpack.c.b16 %v173, %v171
    %v180 = vpack.c.b16 %v174, %v172
    %v181 = vpack.c.b16 %v177, %v175
    %v182 = vpack.c.b16 %v178, %v176
    %v219 = vunpack.c.l.b16 %v139
    %v220 = vunpack.c.h.b16 %v139
    %v221 = vunpack.c.l.b16 %v140
    %v222 = vunpack.c.h.b16 %v140
    %v223 = vunpack.c.l.b16 %v141
    %v224 = vunpack.c.h.b16 %v141
    %v225 = vunpack.c.l.b16 %v142
    %v226 = vunpack.c.h.b16 %v142
    %v227 = vunpack.c.l.b16 %v143
    %v228 = vunpack.c.h.b16 %v143
    %v229 = vunpack.c.l.b16 %v144
    %v230 = vunpack.c.h.b16 %v144
    %v231 = vunpack.c.l.b16 %v145
    %v232 = vunpack.c.h.b16 %v145
    %v233 = vunpack.c.l.b16 %v146
    %v234 = vunpack.c.h.b16 %v146
    %v235 = vunpack.c.l.b16 %v147
    %v236 = vunpack.c.h.b16 %v147
    %v237 = vunpack.c.l.b16 %v148
    %v238 = vunpack.c.h.b16 %v148
    %v239 = vunpack.c.l.b16 %v149
    %v240 = vunpack.c.h.b16 %v149
    %v241 = vunpack.c.l.b16 %v150
    %v242 = vunpack.c.h.b16 %v150
    %v243 = vunpack.c.l.b16 %v151
    %v244 = vunpack.c.h.b16 %v151
    %v245 = vunpack.c.l.b16 %v152
    %v246 = vunpack.c.h.b16 %v152
    %v247 = vunpack.c.l.b16 %v153
    %v248 = vunpack.c.h.b16 %v153
    %v249 = vunpack.c.l.b16 %v154
    %v250 = vunpack.c.h.b16 %v154
    %v251 = vunpack.c.l.b16 %v155
    %v252 = vunpack.c.h.b16 %v155
    %v253 = vunpack.c.l.b16 %v156
    %v254 = vunpack.c.h.b16 %v156
    %v255 = vunpack.c.l.b16 %v157
    %v256 = vunpack.c.h.b16 %v157
    %v257 = vunpack.c.l.b16 %v158
    %v258 = vunpack.c.h.b16 %v158
    %v259 = vunpack.c.l.b16 %v159
    %v260 = vunpack.c.h.b16 %v159
    %v261 = vunpack.c.l.b16 %v160
    %v262 = vunpack.c.h.b16 %v160
    %v263 = vunpack.c.l.b16 %v161
    %v264 = vunpack.c.h.b16 %v161
    %v265 = vunpack.c.l.b16 %v162
    %v266 = vunpack.c.h.b16 %v162
    %v267 = vunpack.c.l.b16 %v163
    %v268 = vunpack.c.h.b16 %v163
    %v269 = vunpack.c.l.b16 %v164
    %v270 = vunpack.c.h.b16 %v164
    %v271 = vunpack.c.l.b16 %v165
    %v272 = vunpack.c.h.b16 %v165
    %v273 = vunpack.c.l.b16 %v166
    %v274 = vunpack.c.h.b16 %v166
    %v275 = vunpack.c.l.b16 %v167
    %v276 = vunpack.c.h.b16 %v167
    %v277 = vunpack.c.l.b16 %v168
    %v278 = vunpack.c.h.b16 %v168
    %v279 = vunpack.c.l.b16 %v169
    %v280 = vunpack.c.h.b16 %v169
    %v281 = vunpack.c.l.b16 %v170
    %v282 = vunpack.c.h.b16 %v170
    %v283 = vpack.c.b16 %v221, %v219
    %v284 = vpack.c.b16 %v222, %v220
    %v285 = vpack.c.b16 %v225, %v223
    %v286 = vpack.c.b16 %v226, %v224
    %v287 = vpack.c.b16 %v229, %v227
    %v288 = vpack.c.b16 %v230, %v228
    %v289 = vpack.c.b16 %v233, %v231
    %v290 = vpack.c.b16 %v234, %v232
    %v291 = vpack.c.b16 %v237, %v235
    %v292 = vpack.c.b16 %v238, %v236
    %v293 = vpack.c.b16 %v241, %v239
    %v294 = vpack.c.b16 %v242, %v240
    %v295 = vpack.c.b16 %v245, %v243
    %v296 = vpack.c.b16 %v246, %v244
    %v297 = vpack.c.b16 %v249, %v247
    %v298 = vpack.c.b16 %v250, %v248
    %v299 = vpack.c.b16 %v253, %v251
    %v300 = vpack.c.b16 %v254, %v252
    %v301 = vpack.c.b16 %v257, %v255
    %v302 = vpack.c.b16 %v258, %v256
    %v303 = vpack.c.b16 %v261, %v259
    %v304 = vpack.c.b16 %v262, %v260
    %v305 = vpack.c.b16 %v265, %v263
    %v306 = vpack.c.b16 %v266, %v264
    %v307 = vpack.c.b16 %v269, %v267
    %v308 = vpack.c.b16 %v270, %v268
    %v309 = vpack.c.b16 %v273, %v271
    %v310 = vpack.c.b16 %v274, %v272
    %v311 = vpack.c.b16 %v277, %v275
    %v312 = vpack.c.b16 %v278, %v276
    %v313 = vpack.c.b16 %v281, %v279
    %v314 = vpack.c.b16 %v282, %v280
    %347 = vmatprep.subr.bf16.mxu0 %v284
    %348 = vmatpush1.bf16.msra.mxu0 %v283
    %349 = vmatprep.subr.bf16.mxu0 %v286
    %350 = vmatpush1.bf16.msra.mxu0 %v285
    %351 = vmatprep.subr.bf16.mxu0 %v288
    %352 = vmatpush1.bf16.msra.mxu0 %v287
    %353 = vmatprep.subr.bf16.mxu0 %v290
    %354 = vmatpush1.bf16.msra.mxu0 %v289
    %355 = vmatprep.subr.bf16.mxu0 %v292
    %356 = vmatpush1.bf16.msra.mxu0 %v291
    %357 = vmatprep.subr.bf16.mxu0 %v294
    %358 = vmatpush1.bf16.msra.mxu0 %v293
    %359 = vmatprep.subr.bf16.mxu0 %v296
    %360 = vmatpush1.bf16.msra.mxu0 %v295
    %361 = vmatprep.subr.bf16.mxu0 %v298
    %362 = vmatpush1.bf16.msra.mxu0 %v297
    %363 = vmatprep.subr.bf16.mxu0 %v300
    %364 = vmatpush1.bf16.msra.mxu0 %v299
    %365 = vmatprep.subr.bf16.mxu0 %v302
    %366 = vmatpush1.bf16.msra.mxu0 %v301
    %367 = vmatprep.subr.bf16.mxu0 %v304
    %368 = vmatpush1.bf16.msra.mxu0 %v303
    %369 = vmatprep.subr.bf16.mxu0 %v306
    %370 = vmatpush1.bf16.msra.mxu0 %v305
    %371 = vmatprep.subr.bf16.mxu0 %v308
    %372 = vmatpush1.bf16.msra.mxu0 %v307
    %373 = vmatprep.subr.bf16.mxu0 %v310
    %374 = vmatpush1.bf16.msra.mxu0 %v309
    %375 = vmatprep.subr.bf16.mxu0 %v312
    %376 = vmatpush1.bf16.msra.mxu0 %v311
    %377 = vmatprep.subr.bf16.mxu0 %v314
    %378 = vmatpush1.bf16.msra.mxu0 %v313
    %379 = vmatprep.mubr.bf16.mxu0 %v180
    %380 = vmatmul.mubr.bf16.gmra.mrb[0].mxu0 %v179
    %v381 = vpop.f32.mrb[0].mxu0
    %v382 = vadd.f32 0.0, %v381
    %v383 = vpop.f32.mrb[0].mxu0
    %v384 = vadd.f32 0.0, %v383
    %v385 = vpop.f32.mrb[0].mxu0
    %v386 = vadd.f32 0.0, %v385
    %v387 = vpop.f32.mrb[0].mxu0
    %v388 = vadd.f32 0.0, %v387
    %389 = vmatprep.mubr.bf16.mxu0 %v182
    %390 = vmatmul.mubr.bf16.gmra.mrb[0].mxu0 %v181
    %v391 = vpop.f32.mrb[0].mxu0
    %v392 = vadd.f32 0.0, %v391
    %v393 = vpop.f32.mrb[0].mxu0
    %v394 = vadd.f32 0.0, %v393
    %v395 = vpop.f32.mrb[0].mxu0
    %v396 = vadd.f32 0.0, %v395
    %v397 = vpop.f32.mrb[0].mxu0
    %v398 = vadd.f32 0.0, %v397
    %399 = vdwg.mxu0
    %v404 = vunpack.c.l.b16 %v49
    %v405 = vunpack.c.h.b16 %v49
    %v406 = vunpack.c.l.b16 %v50
    %v407 = vunpack.c.h.b16 %v50
    %v408 = vunpack.c.l.b16 %v51
    %v409 = vunpack.c.h.b16 %v51
    %v410 = vunpack.c.l.b16 %v52
    %v411 = vunpack.c.h.b16 %v52
    %v412 = vpack.c.b16 %v406, %v404
    %v413 = vpack.c.b16 %v407, %v405
    %v414 = vpack.c.b16 %v410, %v408
    %v415 = vpack.c.b16 %v411, %v409
    %v452 = vunpack.c.l.b16 %v53
    %v453 = vunpack.c.h.b16 %v53
    %v454 = vunpack.c.l.b16 %v54
    %v455 = vunpack.c.h.b16 %v54
    %v456 = vunpack.c.l.b16 %v55
    %v457 = vunpack.c.h.b16 %v55
    %v458 = vunpack.c.l.b16 %v56
    %v459 = vunpack.c.h.b16 %v56
    %v460 = vunpack.c.l.b16 %v57
    %v461 = vunpack.c.h.b16 %v57
    %v462 = vunpack.c.l.b16 %v58
    %v463 = vunpack.c.h.b16 %v58
    %v464 = vunpack.c.l.b16 %v59
    %v465 = vunpack.c.h.b16 %v59
    %v466 = vunpack.c.l.b16 %v60
    %v467 = vunpack.c.h.b16 %v60
    %v468 = vunpack.c.l.b16 %v61
    %v469 = vunpack.c.h.b16 %v61
    %v470 = vunpack.c.l.b16 %v62
    %v471 = vunpack.c.h.b16 %v62
    %v472 = vunpack.c.l.b16 %v63
    %v473 = vunpack.c.h.b16 %v63
    %v474 = vunpack.c.l.b16 %v64
    %v475 = vunpack.c.h.b16 %v64
    %v476 = vunpack.c.l.b16 %v65
    %v477 = vunpack.c.h.b16 %v65
    %v478 = vunpack.c.l.b16 %v66
    %v479 = vunpack.c.h.b16 %v66
    %v480 = vunpack.c.l.b16 %v67
    %v481 = vunpack.c.h.b16 %v67
    %v482 = vunpack.c.l.b16 %v68
    %v483 = vunpack.c.h.b16 %v68
    %v484 = vunpack.c.l.b16 %v69
    %v485 = vunpack.c.h.b16 %v69
    %v486 = vunpack.c.l.b16 %v70
    %v487 = vunpack.c.h.b16 %v70
    %v488 = vunpack.c.l.b16 %v71
    %v489 = vunpack.c.h.b16 %v71
    %v490 = vunpack.c.l.b16 %v72
    %v491 = vunpack.c.h.b16 %v72
    %v492 = vunpack.c.l.b16 %v73
    %v493 = vunpack.c.h.b16 %v73
    %v494 = vunpack.c.l.b16 %v74
    %v495 = vunpack.c.h.b16 %v74
    %v496 = vunpack.c.l.b16 %v75
    %v497 = vunpack.c.h.b16 %v75
    %v498 = vunpack.c.l.b16 %v76
    %v499 = vunpack.c.h.b16 %v76
    %v500 = vunpack.c.l.b16 %v77
    %v501 = vunpack.c.h.b16 %v77
    %v502 = vunpack.c.l.b16 %v78
    %v503 = vunpack.c.h.b16 %v78
    %v504 = vunpack.c.l.b16 %v79
    %v505 = vunpack.c.h.b16 %v79
    %v506 = vunpack.c.l.b16 %v80
    %v507 = vunpack.c.h.b16 %v80
    %v508 = vunpack.c.l.b16 %v81
    %v509 = vunpack.c.h.b16 %v81
    %v510 = vunpack.c.l.b16 %v82
    %v511 = vunpack.c.h.b16 %v82
    %v512 = vunpack.c.l.b16 %v83
    %v513 = vunpack.c.h.b16 %v83
    %v514 = vunpack.c.l.b16 %v84
    %v515 = vunpack.c.h.b16 %v84
    %v516 = vpack.c.b16 %v454, %v452
    %v517 = vpack.c.b16 %v455, %v453
    %v518 = vpack.c.b16 %v458, %v456
    %v519 = vpack.c.b16 %v459, %v457
    %v520 = vpack.c.b16 %v462, %v460
    %v521 = vpack.c.b16 %v463, %v461
    %v522 = vpack.c.b16 %v466, %v464
    %v523 = vpack.c.b16 %v467, %v465
    %v524 = vpack.c.b16 %v470, %v468
    %v525 = vpack.c.b16 %v471, %v469
    %v526 = vpack.c.b16 %v474, %v472
    %v527 = vpack.c.b16 %v475, %v473
    %v528 = vpack.c.b16 %v478, %v476
    %v529 = vpack.c.b16 %v479, %v477
    %v530 = vpack.c.b16 %v482, %v480
    %v531 = vpack.c.b16 %v483, %v481
    %v532 = vpack.c.b16 %v486, %v484
    %v533 = vpack.c.b16 %v487, %v485
    %v534 = vpack.c.b16 %v490, %v488
    %v535 = vpack.c.b16 %v491, %v489
    %v536 = vpack.c.b16 %v494, %v492
    %v537 = vpack.c.b16 %v495, %v493
    %v538 = vpack.c.b16 %v498, %v496
    %v539 = vpack.c.b16 %v499, %v497
    %v540 = vpack.c.b16 %v502, %v500
    %v541 = vpack.c.b16 %v503, %v501
    %v542 = vpack.c.b16 %v506, %v504
    %v543 = vpack.c.b16 %v507, %v505
    %v544 = vpack.c.b16 %v510, %v508
    %v545 = vpack.c.b16 %v511, %v509
    %v546 = vpack.c.b16 %v514, %v512
    %v547 = vpack.c.b16 %v515, %v513
    %580 = vmatprep.subr.bf16.mxu0 %v517
    %581 = vmatpush1.bf16.msra.mxu0 %v516
    %582 = vmatprep.subr.bf16.mxu0 %v519
    %583 = vmatpush1.bf16.msra.mxu0 %v518
    %584 = vmatprep.subr.bf16.mxu0 %v521
    %585 = vmatpush1.bf16.msra.mxu0 %v520
    %586 = vmatprep.subr.bf16.mxu0 %v523
    %587 = vmatpush1.bf16.msra.mxu0 %v522
    %588 = vmatprep.subr.bf16.mxu0 %v525
    %589 = vmatpush1.bf16.msra.mxu0 %v524
    %590 = vmatprep.subr.bf16.mxu0 %v527
    %591 = vmatpush1.bf16.msra.mxu0 %v526
    %592 = vmatprep.subr.bf16.mxu0 %v529
    %593 = vmatpush1.bf16.msra.mxu0 %v528
    %594 = vmatprep.subr.bf16.mxu0 %v531
    %595 = vmatpush1.bf16.msra.mxu0 %v530
    %596 = vmatprep.subr.bf16.mxu0 %v533
    %597 = vmatpush1.bf16.msra.mxu0 %v532
    %598 = vmatprep.subr.bf16.mxu0 %v535
    %599 = vmatpush1.bf16.msra.mxu0 %v534
    %600 = vmatprep.subr.bf16.mxu0 %v537
    %601 = vmatpush1.bf16.msra.mxu0 %v536
    %602 = vmatprep.subr.bf16.mxu0 %v539
    %603 = vmatpush1.bf16.msra.mxu0 %v538
    %604 = vmatprep.subr.bf16.mxu0 %v541
    %605 = vmatpush1.bf16.msra.mxu0 %v540
    %606 = vmatprep.subr.bf16.mxu0 %v543
    %607 = vmatpush1.bf16.msra.mxu0 %v542
    %608 = vmatprep.subr.bf16.mxu0 %v545
    %609 = vmatpush1.bf16.msra.mxu0 %v544
    %610 = vmatprep.subr.bf16.mxu0 %v547
    %611 = vmatpush1.bf16.msra.mxu0 %v546
    %612 = vmatprep.mubr.bf16.mxu0 %v413
    %613 = vmatmul.mubr.bf16.gmra.mrb[0].mxu0 %v412
    %v614 = vpop.f32.mrb[0].mxu0
    %v615 = vadd.f32 %v382, %v614
    %v616 = vpop.f32.mrb[0].mxu0
    %v617 = vadd.f32 %v384, %v616
    %v618 = vpop.f32.mrb[0].mxu0
    %v619 = vadd.f32 %v386, %v618
    %v620 = vpop.f32.mrb[0].mxu0
    %v621 = vadd.f32 %v388, %v620
    %622 = vmatprep.mubr.bf16.mxu0 %v415
    %623 = vmatmul.mubr.bf16.gmra.mrb[0].mxu0 %v414
    %v624 = vpop.f32.mrb[0].mxu0
    %v625 = vadd.f32 %v392, %v624
    %v626 = vpop.f32.mrb[0].mxu0
    %v627 = vadd.f32 %v394, %v626
    %v628 = vpop.f32.mrb[0].mxu0
    %v629 = vadd.f32 %v396, %v628
    %v630 = vpop.f32.mrb[0].mxu0
    %v631 = vadd.f32 %v398, %v630
    %632 = vdwg.mxu0
    %v633 = vld [vmem:[%s0] sm:$0xee]
    %v634 = vld [vmem:[%s0 + $0x18] sm:$0xee]
    %vm639 = vcmask 1042432
    %vm640 = vcmask 1046532
    %vm641 = vmor %vm639, %vm640
    %v642 = vrot.slane %v633, 5
    %v643 = vrot.slane %v642, 4
    %v644 = vrot.slane %v50, 5
    %v645 = vsel %vm641, %v643, %v644
    %v646 = vrot.slane %v644, 4
    %v647 = vrot.slane %v85, 5
    %v648 = vsel %vm641, %v646, %v647
    %v649 = vrot.slane %v634, 5
    %v650 = vrot.slane %v649, 4
    %v651 = vrot.slane %v52, 5
    %v652 = vsel %vm641, %v650, %v651
    %v653 = vrot.slane %v651, 4
    %v654 = vrot.slane %v86, 5
    %v655 = vsel %vm641, %v653, %v654
    %s656 = scalar_lea.vmem [#allocation3], 512
    %v657 = vld [vmem:[%s656] sm:$0xff]
    %v658 = vld [vmem:[%s656 + $0x8] sm:$0xff]
    %v659 = vld [vmem:[%s656 + $0x10] sm:$0xff]
    %v660 = vld [vmem:[%s656 + $0x18] sm:$0xff]
    %v661 = vld [vmem:[%s656 + $0x20] sm:$0xff]
    %v662 = vld [vmem:[%s656 + $0x28] sm:$0xff]
    %v663 = vld [vmem:[%s656 + $0x30] sm:$0xff]
    %v664 = vld [vmem:[%s656 + $0x38] sm:$0xff]
    %v665 = vld [vmem:[%s656 + $0x40] sm:$0xff]
    %v666 = vld [vmem:[%s656 + $0x48] sm:$0xff]
    %v667 = vld [vmem:[%s656 + $0x50] sm:$0xff]
    %v668 = vld [vmem:[%s656 + $0x58] sm:$0xff]
    %v669 = vld [vmem:[%s656 + $0x60] sm:$0xff]
    %v670 = vld [vmem:[%s656 + $0x68] sm:$0xff]
    %v671 = vld [vmem:[%s656 + $0x70] sm:$0xff]
    %v672 = vld [vmem:[%s656 + $0x78] sm:$0xff]
    %v673 = vld [vmem:[%s656 + $0x80] sm:$0xff]
    %v674 = vld [vmem:[%s656 + $0x88] sm:$0xff]
    %v675 = vld [vmem:[%s656 + $0x90] sm:$0xff]
    %v676 = vld [vmem:[%s656 + $0x98] sm:$0xff]
    %v677 = vld [vmem:[%s656 + $0xa0] sm:$0xff]
    %v678 = vld [vmem:[%s656 + $0xa8] sm:$0xff]
    %v679 = vld [vmem:[%s656 + $0xb0] sm:$0xff]
    %v680 = vld [vmem:[%s656 + $0xb8] sm:$0xff]
    %v681 = vld [vmem:[%s656 + $0xc0] sm:$0xff]
    %v682 = vld [vmem:[%s656 + $0xc8] sm:$0xff]
    %v683 = vld [vmem:[%s656 + $0xd0] sm:$0xff]
    %v684 = vld [vmem:[%s656 + $0xd8] sm:$0xff]
    %v685 = vld [vmem:[%s656 + $0xe0] sm:$0xff]
    %v686 = vld [vmem:[%s656 + $0xe8] sm:$0xff]
    %v687 = vld [vmem:[%s656 + $0xf0] sm:$0xff]
    %v688 = vld [vmem:[%s656 + $0xf8] sm:$0xff]
    %v689 = vunpack.c.l.b16 %v645
    %v690 = vunpack.c.h.b16 %v645
    %v691 = vunpack.c.l.b16 %v648
    %v692 = vunpack.c.h.b16 %v648
    %v693 = vunpack.c.l.b16 %v652
    %v694 = vunpack.c.h.b16 %v652
    %v695 = vunpack.c.l.b16 %v655
    %v696 = vunpack.c.h.b16 %v655
    %v697 = vpack.c.b16 %v691, %v689
    %v698 = vpack.c.b16 %v692, %v690
    %v699 = vpack.c.b16 %v695, %v693
    %v700 = vpack.c.b16 %v696, %v694
    %v737 = vunpack.c.l.b16 %v657
    %v738 = vunpack.c.h.b16 %v657
    %v739 = vunpack.c.l.b16 %v658
    %v740 = vunpack.c.h.b16 %v658
    %v741 = vunpack.c.l.b16 %v659
    %v742 = vunpack.c.h.b16 %v659
    %v743 = vunpack.c.l.b16 %v660
    %v744 = vunpack.c.h.b16 %v660
    %v745 = vunpack.c.l.b16 %v661
    %v746 = vunpack.c.h.b16 %v661
    %v747 = vunpack.c.l.b16 %v662
    %v748 = vunpack.c.h.b16 %v662
    %v749 = vunpack.c.l.b16 %v663
    %v750 = vunpack.c.h.b16 %v663
    %v751 = vunpack.c.l.b16 %v664
    %v752 = vunpack.c.h.b16 %v664
    %v753 = vunpack.c.l.b16 %v665
    %v754 = vunpack.c.h.b16 %v665
    %v755 = vunpack.c.l.b16 %v666
    %v756 = vunpack.c.h.b16 %v666
    %v757 = vunpack.c.l.b16 %v667
    %v758 = vunpack.c.h.b16 %v667
    %v759 = vunpack.c.l.b16 %v668
    %v760 = vunpack.c.h.b16 %v668
    %v761 = vunpack.c.l.b16 %v669
    %v762 = vunpack.c.h.b16 %v669
    %v763 = vunpack.c.l.b16 %v670
    %v764 = vunpack.c.h.b16 %v670
    %v765 = vunpack.c.l.b16 %v671
    %v766 = vunpack.c.h.b16 %v671
    %v767 = vunpack.c.l.b16 %v672
    %v768 = vunpack.c.h.b16 %v672
    %v769 = vunpack.c.l.b16 %v673
    %v770 = vunpack.c.h.b16 %v673
    %v771 = vunpack.c.l.b16 %v674
    %v772 = vunpack.c.h.b16 %v674
    %v773 = vunpack.c.l.b16 %v675
    %v774 = vunpack.c.h.b16 %v675
    %v775 = vunpack.c.l.b16 %v676
    %v776 = vunpack.c.h.b16 %v676
    %v777 = vunpack.c.l.b16 %v677
    %v778 = vunpack.c.h.b16 %v677
    %v779 = vunpack.c.l.b16 %v678
    %v780 = vunpack.c.h.b16 %v678
    %v781 = vunpack.c.l.b16 %v679
    %v782 = vunpack.c.h.b16 %v679
    %v783 = vunpack.c.l.b16 %v680
    %v784 = vunpack.c.h.b16 %v680
    %v785 = vunpack.c.l.b16 %v681
    %v786 = vunpack.c.h.b16 %v681
    %v787 = vunpack.c.l.b16 %v682
    %v788 = vunpack.c.h.b16 %v682
    %v789 = vunpack.c.l.b16 %v683
    %v790 = vunpack.c.h.b16 %v683
    %v791 = vunpack.c.l.b16 %v684
    %v792 = vunpack.c.h.b16 %v684
    %v793 = vunpack.c.l.b16 %v685
    %v794 = vunpack.c.h.b16 %v685
    %v795 = vunpack.c.l.b16 %v686
    %v796 = vunpack.c.h.b16 %v686
    %v797 = vunpack.c.l.b16 %v687
    %v798 = vunpack.c.h.b16 %v687
    %v799 = vunpack.c.l.b16 %v688
    %v800 = vunpack.c.h.b16 %v688
    %v801 = vpack.c.b16 %v739, %v737
    %v802 = vpack.c.b16 %v740, %v738
    %v803 = vpack.c.b16 %v743, %v741
    %v804 = vpack.c.b16 %v744, %v742
    %v805 = vpack.c.b16 %v747, %v745
    %v806 = vpack.c.b16 %v748, %v746
    %v807 = vpack.c.b16 %v751, %v749
    %v808 = vpack.c.b16 %v752, %v750
    %v809 = vpack.c.b16 %v755, %v753
    %v810 = vpack.c.b16 %v756, %v754
    %v811 = vpack.c.b16 %v759, %v757
    %v812 = vpack.c.b16 %v760, %v758
    %v813 = vpack.c.b16 %v763, %v761
    %v814 = vpack.c.b16 %v764, %v762
    %v815 = vpack.c.b16 %v767, %v765
    %v816 = vpack.c.b16 %v768, %v766
    %v817 = vpack.c.b16 %v771, %v769
    %v818 = vpack.c.b16 %v772, %v770
    %v819 = vpack.c.b16 %v775, %v773
    %v820 = vpack.c.b16 %v776, %v774
    %v821 = vpack.c.b16 %v779, %v777
    %v822 = vpack.c.b16 %v780, %v778
    %v823 = vpack.c.b16 %v783, %v781
    %v824 = vpack.c.b16 %v784, %v782
    %v825 = vpack.c.b16 %v787, %v785
    %v826 = vpack.c.b16 %v788, %v786
    %v827 = vpack.c.b16 %v791, %v789
    %v828 = vpack.c.b16 %v792, %v790
    %v829 = vpack.c.b16 %v795, %v793
    %v830 = vpack.c.b16 %v796, %v794
    %v831 = vpack.c.b16 %v799, %v797
    %v832 = vpack.c.b16 %v800, %v798
    %865 = vmatprep.subr.bf16.mxu0 %v802
    %866 = vmatpush1.bf16.msra.mxu0 %v801
    %867 = vmatprep.subr.bf16.mxu0 %v804
    %868 = vmatpush1.bf16.msra.mxu0 %v803
    %869 = vmatprep.subr.bf16.mxu0 %v806
    %870 = vmatpush1.bf16.msra.mxu0 %v805
    %871 = vmatprep.subr.bf16.mxu0 %v808
    %872 = vmatpush1.bf16.msra.mxu0 %v807
    %873 = vmatprep.subr.bf16.mxu0 %v810
    %874 = vmatpush1.bf16.msra.mxu0 %v809
    %875 = vmatprep.subr.bf16.mxu0 %v812
    %876 = vmatpush1.bf16.msra.mxu0 %v811
    %877 = vmatprep.subr.bf16.mxu0 %v814
    %878 = vmatpush1.bf16.msra.mxu0 %v813
    %879 = vmatprep.subr.bf16.mxu0 %v816
    %880 = vmatpush1.bf16.msra.mxu0 %v815
    %881 = vmatprep.subr.bf16.mxu0 %v818
    %882 = vmatpush1.bf16.msra.mxu0 %v817
    %883 = vmatprep.subr.bf16.mxu0 %v820
    %884 = vmatpush1.bf16.msra.mxu0 %v819
    %885 = vmatprep.subr.bf16.mxu0 %v822
    %886 = vmatpush1.bf16.msra.mxu0 %v821
    %887 = vmatprep.subr.bf16.mxu0 %v824
    %888 = vmatpush1.bf16.msra.mxu0 %v823
    %889 = vmatprep.subr.bf16.mxu0 %v826
    %890 = vmatpush1.bf16.msra.mxu0 %v825
    %891 = vmatprep.subr.bf16.mxu0 %v828
    %892 = vmatpush1.bf16.msra.mxu0 %v827
    %893 = vmatprep.subr.bf16.mxu0 %v830
    %894 = vmatpush1.bf16.msra.mxu0 %v829
    %895 = vmatprep.subr.bf16.mxu0 %v832
    %896 = vmatpush1.bf16.msra.mxu0 %v831
    %897 = vmatprep.mubr.bf16.mxu0 %v698
    %898 = vmatmul.mubr.bf16.gmra.mrb[0].mxu0 %v697
    %v899 = vpop.f32.mrb[0].mxu0
    %v900 = vadd.f32 0.0, %v899
    %v901 = vpop.f32.mrb[0].mxu0
    %v902 = vadd.f32 0.0, %v901
    %v903 = vpop.f32.mrb[0].mxu0
    %v904 = vadd.f32 0.0, %v903
    %v905 = vpop.f32.mrb[0].mxu0
    %v906 = vadd.f32 0.0, %v905
    %907 = vmatprep.mubr.bf16.mxu0 %v700
    %908 = vmatmul.mubr.bf16.gmra.mrb[0].mxu0 %v699
    %v909 = vpop.f32.mrb[0].mxu0
    %v910 = vadd.f32 0.0, %v909
    %v911 = vpop.f32.mrb[0].mxu0
    %v912 = vadd.f32 0.0, %v911
    %v913 = vpop.f32.mrb[0].mxu0
    %v914 = vadd.f32 0.0, %v913
    %v915 = vpop.f32.mrb[0].mxu0
    %v916 = vadd.f32 0.0, %v915
    %917 = vdwg.mxu0
    %v918 = vadd.f32 %v615, %v900
    %v919 = vadd.f32 %v617, %v902
    %v920 = vadd.f32 %v619, %v904
    %v921 = vadd.f32 %v621, %v906
    %v922 = vadd.f32 %v625, %v910
    %v923 = vadd.f32 %v627, %v912
    %v924 = vadd.f32 %v629, %v914
    %v925 = vadd.f32 %v631, %v916
    %v926 = vld [vmem:[%s2] sm:$0x3]
    %v928 = vlaneseq
    %v929 = vshrl.u32 %v928, 7
    %v930 = vsub.s32 0, %v929
    %v931 = vrot.slane %v926, %v930
    %v932 = vlaneseq
    %v933 = vshrl.u32 %v932, 7
    %v934 = vsub.s32 1, %v933
    %v935 = vrot.slane %v926, %v934
    %v938 = vadd.f32 %v918, %v931
    %v939 = vadd.f32 %v919, %v935
    %v940 = vadd.f32 %v920, %v931
    %v941 = vadd.f32 %v921, %v935
    %v942 = vadd.f32 %v922, %v931
    %v943 = vadd.f32 %v923, %v935
    %v944 = vadd.f32 %v924, %v931
    %v945 = vadd.f32 %v925, %v935
    %v946 = vmax.f32 %v938, 0.0
    %v947 = vmax.f32 %v939, 0.0
    %v948 = vmax.f32 %v940, 0.0
    %v949 = vmax.f32 %v941, 0.0
    %v950 = vmax.f32 %v942, 0.0
    %v951 = vmax.f32 %v943, 0.0
    %v952 = vmax.f32 %v944, 0.0
    %v953 = vmax.f32 %v945, 0.0
    %v954 = vpack.c.bf16 %v948, %v946
    %v955 = vpack.c.bf16 %v949, %v947
    %v956 = vpack.c.bf16 %v952, %v950
    %v957 = vpack.c.bf16 %v953, %v951
    %v962 = vunpack.c.l.b16 %v954
    %v963 = vunpack.c.l.b16 %v955
    %v964 = vunpack.c.h.b16 %v954
    %v965 = vunpack.c.h.b16 %v955
    %v966 = vunpack.c.l.b16 %v956
    %v967 = vunpack.c.l.b16 %v957
    %v968 = vunpack.c.h.b16 %v956
    %v969 = vunpack.c.h.b16 %v957
    %v970 = vpack.c.b16 %v963, %v962
    %v971 = vpack.c.b16 %v965, %v964
    %v972 = vpack.c.b16 %v967, %v966
    %v973 = vpack.c.b16 %v969, %v968
    %vm974 = vsmask.f32 256
    %vm975 = vsmask.f32 4368
    %vm976 = vmor %vm974, %vm975
    %v978 = vshrl.u32 %v970, 16
    %v980 = vrot.slane %v978, 7
    %v981 = vshll.u32 %v970, 16
    %v983 = vor.u32 %v980, %v981
    %v984 = vrot.slane %v980, 4
    %v986 = vshrl.u32 %v971, 16
    %v988 = vrot.slane %v986, 7
    %v989 = vshll.u32 %v971, 16
    %v991 = vor.u32 %v988, %v989
    %v992 = vsel %vm976, %v984, %v991
    %v993 = vrot.slane %v988, 4
    %v995 = vshrl.u32 %v972, 16
    %v997 = vrot.slane %v995, 7
    %v998 = vshll.u32 %v972, 16
    %v1000 = vor.u32 %v997, %v998
    %v1001 = vrot.slane %v997, 4
    %v1003 = vshrl.u32 %v973, 16
    %v1005 = vrot.slane %v1003, 7
    %v1006 = vshll.u32 %v973, 16
    %v1008 = vor.u32 %v1005, %v1006
    %v1009 = vsel %vm976, %v1001, %v1008
    %v1010 = vrot.slane %v1005, 4
    %vm1017 = vcmask 1043456
    %vm1018 = vsmask.f32 7938
    %vm1019 = vmand %vm1017, %vm1018
    %vm1020 = vcmask 1047556
    %vm1021 = vsmask.f32 7954
    %vm1022 = vmand %vm1020, %vm1021
    %vm1023 = vmor %vm1022, %vm1019
    %v1024 = vld [vmem:[#allocation2] sm:$0xff]
    %v1025 = vsel %vm1023, %v983, %v1024
    %1026 = vst [vmem:[#allocation2] sm:$0xff] %v1025
    %1027 = vst [vmem:[#allocation2 + $0x8] sm:$0xff] %v992
    %vm1028 = vcmask 1040384
    %vm1029 = vmand %vm1028, %vm974
    %vm1030 = vcmask 1044484
    %vm1031 = vsmask.f32 4352
    %vm1032 = vmand %vm1030, %vm1031
    %vm1033 = vmor %vm1032, %vm1029
    %v1034 = vld [vmem:[#allocation2 + $0x10] sm:$0x11]
    %v1035 = vsel %vm1033, %v993, %v1034
    %1036 = vst [vmem:[#allocation2 + $0x10] sm:$0x11] %v1035
    %v1037 = vld [vmem:[#allocation2 + $0x18] sm:$0xff]
    %v1038 = vsel %vm1023, %v1000, %v1037
    %1039 = vst [vmem:[#allocation2 + $0x18] sm:$0xff] %v1038
    %1040 = vst [vmem:[#allocation2 + $0x20] sm:$0xff] %v1009
    %v1041 = vld [vmem:[#allocation2 + $0x28] sm:$0x11]
    %v1042 = vsel %vm1033, %v1010, %v1041
    %1043 = vst [vmem:[#allocation2 + $0x28] sm:$0x11] %v1042
    %v1046 = vld [vmem:[#allocation2] sm:$0x11]
    %v1047 = vsel %vm1033, %v970, %v1046
    %1048 = vst [vmem:[#allocation2] sm:$0x11] %v1047
    %v1049 = vld [vmem:[#allocation2 + $0x18] sm:$0x11]
    %v1050 = vsel %vm1033, %v972, %v1049
    %1051 = vst [vmem:[#allocation2 + $0x18] sm:$0x11] %v1050
    %v1052 = vrot.slane %v971, 7
    %v1053 = vrot.slane %v1052, 4
    %v1054 = vrot.slane %v973, 7
    %v1055 = vrot.slane %v1054, 4
    %vm1058 = vmand %vm1028, %vm1018
    %vm1059 = vmand %vm1030, %vm1021
    %vm1060 = vmor %vm1059, %vm1058
    %v1061 = vld [vmem:[#allocation2 + $0x10] sm:$0x11]
    %v1062 = vsel %vm1060, %v1053, %v1061
    %1063 = vst [vmem:[#allocation2 + $0x10] sm:$0x11] %v1062
    %v1064 = vld [vmem:[#allocation2 + $0x28] sm:$0x11]
    %v1065 = vsel %vm1060, %v1055, %v1064
    %1066 = vst [vmem:[#allocation2 + $0x28] sm:$0x11] %v1065
    %v1067 = vld [vmem:[#allocation2] sm:$0xff]
    %v1068 = vld [vmem:[#allocation2 + $0x8] sm:$0xff]
    %v1069 = vld [vmem:[#allocation2 + $0x18] sm:$0xff]
    %v1070 = vld [vmem:[#allocation2 + $0x20] sm:$0xff]
    %v1071 = vld [vmem:[#allocation6] sm:$0xff]
    %v1072 = vld [vmem:[#allocation6 + $0x8] sm:$0xff]
    %v1073 = vld [vmem:[#allocation6 + $0x10] sm:$0xff]
    %v1074 = vld [vmem:[#allocation6 + $0x18] sm:$0xff]
    %v1075 = vld [vmem:[#allocation6 + $0x20] sm:$0xff]
    %v1076 = vld [vmem:[#allocation6 + $0x28] sm:$0xff]
    %v1077 = vld [vmem:[#allocation6 + $0x30] sm:$0xff]
    %v1078 = vld [vmem:[#allocation6 + $0x38] sm:$0xff]
    %v1079 = vld [vmem:[#allocation6 + $0x40] sm:$0xff]
    %v1080 = vld [vmem:[#allocation6 + $0x48] sm:$0xff]
    %v1081 = vld [vmem:[#allocation6 + $0x50] sm:$0xff]
    %v1082 = vld [vmem:[#allocation6 + $0x58] sm:$0xff]
    %v1083 = vld [vmem:[#allocation6 + $0x60] sm:$0xff]
    %v1084 = vld [vmem:[#allocation6 + $0x68] sm:$0xff]
    %v1085 = vld [vmem:[#allocation6 + $0x70] sm:$0xff]
    %v1086 = vld [vmem:[#allocation6 + $0x78] sm:$0xff]
    %v1087 = vld [vmem:[#allocation6 + $0x80] sm:$0xff]
    %v1088 = vld [vmem:[#allocation6 + $0x88] sm:$0xff]
    %v1089 = vld [vmem:[#allocation6 + $0x90] sm:$0xff]
    %v1090 = vld [vmem:[#allocation6 + $0x98] sm:$0xff]
    %v1091 = vld [vmem:[#allocation6 + $0xa0] sm:$0xff]
    %v1092 = vld [vmem:[#allocation6 + $0xa8] sm:$0xff]
    %v1093 = vld [vmem:[#allocation6 + $0xb0] sm:$0xff]
    %v1094 = vld [vmem:[#allocation6 + $0xb8] sm:$0xff]
    %v1095 = vld [vmem:[#allocation6 + $0xc0] sm:$0xff]
    %v1096 = vld [vmem:[#allocation6 + $0xc8] sm:$0xff]
    %v1097 = vld [vmem:[#allocation6 + $0xd0] sm:$0xff]
    %v1098 = vld [vmem:[#allocation6 + $0xd8] sm:$0xff]
    %v1099 = vld [vmem:[#allocation6 + $0xe0] sm:$0xff]
    %v1100 = vld [vmem:[#allocation6 + $0xe8] sm:$0xff]
    %v1101 = vld [vmem:[#allocation6 + $0xf0] sm:$0xff]
    %v1102 = vld [vmem:[#allocation6 + $0xf8] sm:$0xff]
    %v1103 = vld [vmem:[#allocation2 + $0x10] sm:$0x11]
    %v1104 = vld [vmem:[#allocation2 + $0x28] sm:$0x11]
    %v1106 = vshrl.u32 %v1067, 16
    %v1108 = vrot.slane %v1106, 4
    %v1109 = vshll.u32 %v1067, 16
    %v1111 = vrot.slane %v1109, 5
    %v1112 = vor.u32 %v1108, %v1111
    %v1113 = vrot.slane %v1112, 4
    %v1115 = vshll.u32 %v1068, 16
    %v1117 = vrot.slane %v1115, 5
    %v1118 = vsel %vm89, %v1113, %v1117
    %v1119 = vshrl.u32 %v1068, 16
    %v1121 = vrot.slane %v1119, 4
    %v1122 = vor.u32 %v1121, %v1117
    %v1123 = vrot.slane %v1122, 4
    %v1125 = vshll.u32 %v1103, 16
    %v1127 = vrot.slane %v1125, 5
    %v1128 = vsel %vm89, %v1123, %v1127
    %v1130 = vshrl.u32 %v1069, 16
    %v1132 = vrot.slane %v1130, 4
    %v1133 = vshll.u32 %v1069, 16
    %v1135 = vrot.slane %v1133, 5
    %v1136 = vor.u32 %v1132, %v1135
    %v1137 = vrot.slane %v1136, 4
    %v1139 = vshll.u32 %v1070, 16
    %v1141 = vrot.slane %v1139, 5
    %v1142 = vsel %vm89, %v1137, %v1141
    %v1143 = vshrl.u32 %v1070, 16
    %v1145 = vrot.slane %v1143, 4
    %v1146 = vor.u32 %v1145, %v1141
    %v1147 = vrot.slane %v1146, 4
    %v1149 = vshll.u32 %v1104, 16
    %v1151 = vrot.slane %v1149, 5
    %v1152 = vsel %vm89, %v1147, %v1151
    %s1153 = scalar_lea.vmem [#allocation6], 256
    %v1154 = vld [vmem:[%s1153] sm:$0xff]
    %v1155 = vld [vmem:[%s1153 + $0x8] sm:$0xff]
    %v1156 = vld [vmem:[%s1153 + $0x10] sm:$0xff]
    %v1157 = vld [vmem:[%s1153 + $0x18] sm:$0xff]
    %v1158 = vld [vmem:[%s1153 + $0x20] sm:$0xff]
    %v1159 = vld [vmem:[%s1153 + $0x28] sm:$0xff]
    %v1160 = vld [vmem:[%s1153 + $0x30] sm:$0xff]
    %v1161 = vld [vmem:[%s1153 + $0x38] sm:$0xff]
    %v1162 = vld [vmem:[%s1153 + $0x40] sm:$0xff]
    %v1163 = vld [vmem:[%s1153 + $0x48] sm:$0xff]
    %v1164 = vld [vmem:[%s1153 + $0x50] sm:$0xff]
    %v1165 = vld [vmem:[%s1153 + $0x58] sm:$0xff]
    %v1166 = vld [vmem:[%s1153 + $0x60] sm:$0xff]
    %v1167 = vld [vmem:[%s1153 + $0x68] sm:$0xff]
    %v1168 = vld [vmem:[%s1153 + $0x70] sm:$0xff]
    %v1169 = vld [vmem:[%s1153 + $0x78] sm:$0xff]
    %v1170 = vld [vmem:[%s1153 + $0x80] sm:$0xff]
    %v1171 = vld [vmem:[%s1153 + $0x88] sm:$0xff]
    %v1172 = vld [vmem:[%s1153 + $0x90] sm:$0xff]
    %v1173 = vld [vmem:[%s1153 + $0x98] sm:$0xff]
    %v1174 = vld [vmem:[%s1153 + $0xa0] sm:$0xff]
    %v1175 = vld [vmem:[%s1153 + $0xa8] sm:$0xff]
    %v1176 = vld [vmem:[%s1153 + $0xb0] sm:$0xff]
    %v1177 = vld [vmem:[%s1153 + $0xb8] sm:$0xff]
    %v1178 = vld [vmem:[%s1153 + $0xc0] sm:$0xff]
    %v1179 = vld [vmem:[%s1153 + $0xc8] sm:$0xff]
    %v1180 = vld [vmem:[%s1153 + $0xd0] sm:$0xff]
    %v1181 = vld [vmem:[%s1153 + $0xd8] sm:$0xff]
    %v1182 = vld [vmem:[%s1153 + $0xe0] sm:$0xff]
    %v1183 = vld [vmem:[%s1153 + $0xe8] sm:$0xff]
    %v1184 = vld [vmem:[%s1153 + $0xf0] sm:$0xff]
    %v1185 = vld [vmem:[%s1153 + $0xf8] sm:$0xff]
    %v1186 = vunpack.c.l.b16 %v1118
    %v1187 = vunpack.c.h.b16 %v1118
    %v1188 = vunpack.c.l.b16 %v1128
    %v1189 = vunpack.c.h.b16 %v1128
    %v1190 = vunpack.c.l.b16 %v1142
    %v1191 = vunpack.c.h.b16 %v1142
    %v1192 = vunpack.c.l.b16 %v1152
    %v1193 = vunpack.c.h.b16 %v1152
    %v1194 = vpack.c.b16 %v1188, %v1186
    %v1195 = vpack.c.b16 %v1189, %v1187
    %v1196 = vpack.c.b16 %v1192, %v1190
    %v1197 = vpack.c.b16 %v1193, %v1191
    %v1234 = vunpack.c.l.b16 %v1154
    %v1235 = vunpack.c.h.b16 %v1154
    %v1236 = vunpack.c.l.b16 %v1155
    %v1237 = vunpack.c.h.b16 %v1155
    %v1238 = vunpack.c.l.b16 %v1156
    %v1239 = vunpack.c.h.b16 %v1156
    %v1240 = vunpack.c.l.b16 %v1157
    %v1241 = vunpack.c.h.b16 %v1157
    %v1242 = vunpack.c.l.b16 %v1158
    %v1243 = vunpack.c.h.b16 %v1158
    %v1244 = vunpack.c.l.b16 %v1159
    %v1245 = vunpack.c.h.b16 %v1159
    %v1246 = vunpack.c.l.b16 %v1160
    %v1247 = vunpack.c.h.b16 %v1160
    %v1248 = vunpack.c.l.b16 %v1161
    %v1249 = vunpack.c.h.b16 %v1161
    %v1250 = vunpack.c.l.b16 %v1162
    %v1251 = vunpack.c.h.b16 %v1162
    %v1252 = vunpack.c.l.b16 %v1163
    %v1253 = vunpack.c.h.b16 %v1163
    %v1254 = vunpack.c.l.b16 %v1164
    %v1255 = vunpack.c.h.b16 %v1164
    %v1256 = vunpack.c.l.b16 %v1165
    %v1257 = vunpack.c.h.b16 %v1165
    %v1258 = vunpack.c.l.b16 %v1166
    %v1259 = vunpack.c.h.b16 %v1166
    %v1260 = vunpack.c.l.b16 %v1167
    %v1261 = vunpack.c.h.b16 %v1167
    %v1262 = vunpack.c.l.b16 %v1168
    %v1263 = vunpack.c.h.b16 %v1168
    %v1264 = vunpack.c.l.b16 %v1169
    %v1265 = vunpack.c.h.b16 %v1169
    %v1266 = vunpack.c.l.b16 %v1170
    %v1267 = vunpack.c.h.b16 %v1170
    %v1268 = vunpack.c.l.b16 %v1171
    %v1269 = vunpack.c.h.b16 %v1171
    %v1270 = vunpack.c.l.b16 %v1172
    %v1271 = vunpack.c.h.b16 %v1172
    %v1272 = vunpack.c.l.b16 %v1173
    %v1273 = vunpack.c.h.b16 %v1173
    %v1274 = vunpack.c.l.b16 %v1174
    %v1275 = vunpack.c.h.b16 %v1174
    %v1276 = vunpack.c.l.b16 %v1175
    %v1277 = vunpack.c.h.b16 %v1175
    %v1278 = vunpack.c.l.b16 %v1176
    %v1279 = vunpack.c.h.b16 %v1176
    %v1280 = vunpack.c.l.b16 %v1177
    %v1281 = vunpack.c.h.b16 %v1177
    %v1282 = vunpack.c.l.b16 %v1178
    %v1283 = vunpack.c.h.b16 %v1178
    %v1284 = vunpack.c.l.b16 %v1179
    %v1285 = vunpack.c.h.b16 %v1179
    %v1286 = vunpack.c.l.b16 %v1180
    %v1287 = vunpack.c.h.b16 %v1180
    %v1288 = vunpack.c.l.b16 %v1181
    %v1289 = vunpack.c.h.b16 %v1181
    %v1290 = vunpack.c.l.b16 %v1182
    %v1291 = vunpack.c.h.b16 %v1182
    %v1292 = vunpack.c.l.b16 %v1183
    %v1293 = vunpack.c.h.b16 %v1183
    %v1294 = vunpack.c.l.b16 %v1184
    %v1295 = vunpack.c.h.b16 %v1184
    %v1296 = vunpack.c.l.b16 %v1185
    %v1297 = vunpack.c.h.b16 %v1185
    %v1298 = vpack.c.b16 %v1236, %v1234
    %v1299 = vpack.c.b16 %v1237, %v1235
    %v1300 = vpack.c.b16 %v1240, %v1238
    %v1301 = vpack.c.b16 %v1241, %v1239
    %v1302 = vpack.c.b16 %v1244, %v1242
    %v1303 = vpack.c.b16 %v1245, %v1243
    %v1304 = vpack.c.b16 %v1248, %v1246
    %v1305 = vpack.c.b16 %v1249, %v1247
    %v1306 = vpack.c.b16 %v1252, %v1250
    %v1307 = vpack.c.b16 %v1253, %v1251
    %v1308 = vpack.c.b16 %v1256, %v1254
    %v1309 = vpack.c.b16 %v1257, %v1255
    %v1310 = vpack.c.b16 %v1260, %v1258
    %v1311 = vpack.c.b16 %v1261, %v1259
    %v1312 = vpack.c.b16 %v1264, %v1262
    %v1313 = vpack.c.b16 %v1265, %v1263
    %v1314 = vpack.c.b16 %v1268, %v1266
    %v1315 = vpack.c.b16 %v1269, %v1267
    %v1316 = vpack.c.b16 %v1272, %v1270
    %v1317 = vpack.c.b16 %v1273, %v1271
    %v1318 = vpack.c.b16 %v1276, %v1274
    %v1319 = vpack.c.b16 %v1277, %v1275
    %v1320 = vpack.c.b16 %v1280, %v1278
    %v1321 = vpack.c.b16 %v1281, %v1279
    %v1322 = vpack.c.b16 %v1284, %v1282
    %v1323 = vpack.c.b16 %v1285, %v1283
    %v1324 = vpack.c.b16 %v1288, %v1286
    %v1325 = vpack.c.b16 %v1289, %v1287
    %v1326 = vpack.c.b16 %v1292, %v1290
    %v1327 = vpack.c.b16 %v1293, %v1291
    %v1328 = vpack.c.b16 %v1296, %v1294
    %v1329 = vpack.c.b16 %v1297, %v1295
    %1362 = vmatprep.subr.bf16.mxu0 %v1299
    %1363 = vmatpush1.bf16.msra.mxu0 %v1298
    %1364 = vmatprep.subr.bf16.mxu0 %v1301
    %1365 = vmatpush1.bf16.msra.mxu0 %v1300
    %1366 = vmatprep.subr.bf16.mxu0 %v1303
    %1367 = vmatpush1.bf16.msra.mxu0 %v1302
    %1368 = vmatprep.subr.bf16.mxu0 %v1305
    %1369 = vmatpush1.bf16.msra.mxu0 %v1304
    %1370 = vmatprep.subr.bf16.mxu0 %v1307
    %1371 = vmatpush1.bf16.msra.mxu0 %v1306
    %1372 = vmatprep.subr.bf16.mxu0 %v1309
    %1373 = vmatpush1.bf16.msra.mxu0 %v1308
    %1374 = vmatprep.subr.bf16.mxu0 %v1311
    %1375 = vmatpush1.bf16.msra.mxu0 %v1310
    %1376 = vmatprep.subr.bf16.mxu0 %v1313
    %1377 = vmatpush1.bf16.msra.mxu0 %v1312
    %1378 = vmatprep.subr.bf16.mxu0 %v1315
    %1379 = vmatpush1.bf16.msra.mxu0 %v1314
    %1380 = vmatprep.subr.bf16.mxu0 %v1317
    %1381 = vmatpush1.bf16.msra.mxu0 %v1316
    %1382 = vmatprep.subr.bf16.mxu0 %v1319
    %1383 = vmatpush1.bf16.msra.mxu0 %v1318
    %1384 = vmatprep.subr.bf16.mxu0 %v1321
    %1385 = vmatpush1.bf16.msra.mxu0 %v1320
    %1386 = vmatprep.subr.bf16.mxu0 %v1323
    %1387 = vmatpush1.bf16.msra.mxu0 %v1322
    %1388 = vmatprep.subr.bf16.mxu0 %v1325
    %1389 = vmatpush1.bf16.msra.mxu0 %v1324
    %1390 = vmatprep.subr.bf16.mxu0 %v1327
    %1391 = vmatpush1.bf16.msra.mxu0 %v1326
    %1392 = vmatprep.subr.bf16.mxu0 %v1329
    %1393 = vmatpush1.bf16.msra.mxu0 %v1328
    %1394 = vmatprep.mubr.bf16.mxu0 %v1195
    %1395 = vmatmul.mubr.bf16.gmra.mrb[0].mxu0 %v1194
    %v1396 = vpop.f32.mrb[0].mxu0
    %v1397 = vadd.f32 0.0, %v1396
    %v1398 = vpop.f32.mrb[0].mxu0
    %v1399 = vadd.f32 0.0, %v1398
    %v1400 = vpop.f32.mrb[0].mxu0
    %v1401 = vadd.f32 0.0, %v1400
    %v1402 = vpop.f32.mrb[0].mxu0
    %v1403 = vadd.f32 0.0, %v1402
    %1404 = vmatprep.mubr.bf16.mxu0 %v1197
    %1405 = vmatmul.mubr.bf16.gmra.mrb[0].mxu0 %v1196
    %v1406 = vpop.f32.mrb[0].mxu0
    %v1407 = vadd.f32 0.0, %v1406
    %v1408 = vpop.f32.mrb[0].mxu0
    %v1409 = vadd.f32 0.0, %v1408
    %v1410 = vpop.f32.mrb[0].mxu0
    %v1411 = vadd.f32 0.0, %v1410
    %v1412 = vpop.f32.mrb[0].mxu0
    %v1413 = vadd.f32 0.0, %v1412
    %1414 = vdwg.mxu0
    %v1419 = vunpack.c.l.b16 %v1067
    %v1420 = vunpack.c.h.b16 %v1067
    %v1421 = vunpack.c.l.b16 %v1068
    %v1422 = vunpack.c.h.b16 %v1068
    %v1423 = vunpack.c.l.b16 %v1069
    %v1424 = vunpack.c.h.b16 %v1069
    %v1425 = vunpack.c.l.b16 %v1070
    %v1426 = vunpack.c.h.b16 %v1070
    %v1427 = vpack.c.b16 %v1421, %v1419
    %v1428 = vpack.c.b16 %v1422, %v1420
    %v1429 = vpack.c.b16 %v1425, %v1423
    %v1430 = vpack.c.b16 %v1426, %v1424
    %v1467 = vunpack.c.l.b16 %v1071
    %v1468 = vunpack.c.h.b16 %v1071
    %v1469 = vunpack.c.l.b16 %v1072
    %v1470 = vunpack.c.h.b16 %v1072
    %v1471 = vunpack.c.l.b16 %v1073
    %v1472 = vunpack.c.h.b16 %v1073
    %v1473 = vunpack.c.l.b16 %v1074
    %v1474 = vunpack.c.h.b16 %v1074
    %v1475 = vunpack.c.l.b16 %v1075
    %v1476 = vunpack.c.h.b16 %v1075
    %v1477 = vunpack.c.l.b16 %v1076
    %v1478 = vunpack.c.h.b16 %v1076
    %v1479 = vunpack.c.l.b16 %v1077
    %v1480 = vunpack.c.h.b16 %v1077
    %v1481 = vunpack.c.l.b16 %v1078
    %v1482 = vunpack.c.h.b16 %v1078
    %v1483 = vunpack.c.l.b16 %v1079
    %v1484 = vunpack.c.h.b16 %v1079
    %v1485 = vunpack.c.l.b16 %v1080
    %v1486 = vunpack.c.h.b16 %v1080
    %v1487 = vunpack.c.l.b16 %v1081
    %v1488 = vunpack.c.h.b16 %v1081
    %v1489 = vunpack.c.l.b16 %v1082
    %v1490 = vunpack.c.h.b16 %v1082
    %v1491 = vunpack.c.l.b16 %v1083
    %v1492 = vunpack.c.h.b16 %v1083
    %v1493 = vunpack.c.l.b16 %v1084
    %v1494 = vunpack.c.h.b16 %v1084
    %v1495 = vunpack.c.l.b16 %v1085
    %v1496 = vunpack.c.h.b16 %v1085
    %v1497 = vunpack.c.l.b16 %v1086
    %v1498 = vunpack.c.h.b16 %v1086
    %v1499 = vunpack.c.l.b16 %v1087
    %v1500 = vunpack.c.h.b16 %v1087
    %v1501 = vunpack.c.l.b16 %v1088
    %v1502 = vunpack.c.h.b16 %v1088
    %v1503 = vunpack.c.l.b16 %v1089
    %v1504 = vunpack.c.h.b16 %v1089
    %v1505 = vunpack.c.l.b16 %v1090
    %v1506 = vunpack.c.h.b16 %v1090
    %v1507 = vunpack.c.l.b16 %v1091
    %v1508 = vunpack.c.h.b16 %v1091
    %v1509 = vunpack.c.l.b16 %v1092
    %v1510 = vunpack.c.h.b16 %v1092
    %v1511 = vunpack.c.l.b16 %v1093
    %v1512 = vunpack.c.h.b16 %v1093
    %v1513 = vunpack.c.l.b16 %v1094
    %v1514 = vunpack.c.h.b16 %v1094
    %v1515 = vunpack.c.l.b16 %v1095
    %v1516 = vunpack.c.h.b16 %v1095
    %v1517 = vunpack.c.l.b16 %v1096
    %v1518 = vunpack.c.h.b16 %v1096
    %v1519 = vunpack.c.l.b16 %v1097
    %v1520 = vunpack.c.h.b16 %v1097
    %v1521 = vunpack.c.l.b16 %v1098
    %v1522 = vunpack.c.h.b16 %v1098
    %v1523 = vunpack.c.l.b16 %v1099
    %v1524 = vunpack.c.h.b16 %v1099
    %v1525 = vunpack.c.l.b16 %v1100
    %v1526 = vunpack.c.h.b16 %v1100
    %v1527 = vunpack.c.l.b16 %v1101
    %v1528 = vunpack.c.h.b16 %v1101
    %v1529 = vunpack.c.l.b16 %v1102
    %v1530 = vunpack.c.h.b16 %v1102
    %v1531 = vpack.c.b16 %v1469, %v1467
    %v1532 = vpack.c.b16 %v1470, %v1468
    %v1533 = vpack.c.b16 %v1473, %v1471
    %v1534 = vpack.c.b16 %v1474, %v1472
    %v1535 = vpack.c.b16 %v1477, %v1475
    %v1536 = vpack.c.b16 %v1478, %v1476
    %v1537 = vpack.c.b16 %v1481, %v1479
    %v1538 = vpack.c.b16 %v1482, %v1480
    %v1539 = vpack.c.b16 %v1485, %v1483
    %v1540 = vpack.c.b16 %v1486, %v1484
    %v1541 = vpack.c.b16 %v1489, %v1487
    %v1542 = vpack.c.b16 %v1490, %v1488
    %v1543 = vpack.c.b16 %v1493, %v1491
    %v1544 = vpack.c.b16 %v1494, %v1492
    %v1545 = vpack.c.b16 %v1497, %v1495
    %v1546 = vpack.c.b16 %v1498, %v1496
    %v1547 = vpack.c.b16 %v1501, %v1499
    %v1548 = vpack.c.b16 %v1502, %v1500
    %v1549 = vpack.c.b16 %v1505, %v1503
    %v1550 = vpack.c.b16 %v1506, %v1504
    %v1551 = vpack.c.b16 %v1509, %v1507
    %v1552 = vpack.c.b16 %v1510, %v1508
    %v1553 = vpack.c.b16 %v1513, %v1511
    %v1554 = vpack.c.b16 %v1514, %v1512
    %v1555 = vpack.c.b16 %v1517, %v1515
    %v1556 = vpack.c.b16 %v1518, %v1516
    %v1557 = vpack.c.b16 %v1521, %v1519
    %v1558 = vpack.c.b16 %v1522, %v1520
    %v1559 = vpack.c.b16 %v1525, %v1523
    %v1560 = vpack.c.b16 %v1526, %v1524
    %v1561 = vpack.c.b16 %v1529, %v1527
    %v1562 = vpack.c.b16 %v1530, %v1528
    %1595 = vmatprep.subr.bf16.mxu0 %v1532
    %1596 = vmatpush1.bf16.msra.mxu0 %v1531
    %1597 = vmatprep.subr.bf16.mxu0 %v1534
    %1598 = vmatpush1.bf16.msra.mxu0 %v1533
    %1599 = vmatprep.subr.bf16.mxu0 %v1536
    %1600 = vmatpush1.bf16.msra.mxu0 %v1535
    %1601 = vmatprep.subr.bf16.mxu0 %v1538
    %1602 = vmatpush1.bf16.msra.mxu0 %v1537
    %1603 = vmatprep.subr.bf16.mxu0 %v1540
    %1604 = vmatpush1.bf16.msra.mxu0 %v1539
    %1605 = vmatprep.subr.bf16.mxu0 %v1542
    %1606 = vmatpush1.bf16.msra.mxu0 %v1541
    %1607 = vmatprep.subr.bf16.mxu0 %v1544
    %1608 = vmatpush1.bf16.msra.mxu0 %v1543
    %1609 = vmatprep.subr.bf16.mxu0 %v1546
    %1610 = vmatpush1.bf16.msra.mxu0 %v1545
    %1611 = vmatprep.subr.bf16.mxu0 %v1548
    %1612 = vmatpush1.bf16.msra.mxu0 %v1547
    %1613 = vmatprep.subr.bf16.mxu0 %v1550
    %1614 = vmatpush1.bf16.msra.mxu0 %v1549
    %1615 = vmatprep.subr.bf16.mxu0 %v1552
    %1616 = vmatpush1.bf16.msra.mxu0 %v1551
    %1617 = vmatprep.subr.bf16.mxu0 %v1554
    %1618 = vmatpush1.bf16.msra.mxu0 %v1553
    %1619 = vmatprep.subr.bf16.mxu0 %v1556
    %1620 = vmatpush1.bf16.msra.mxu0 %v1555
    %1621 = vmatprep.subr.bf16.mxu0 %v1558
    %1622 = vmatpush1.bf16.msra.mxu0 %v1557
    %1623 = vmatprep.subr.bf16.mxu0 %v1560
    %1624 = vmatpush1.bf16.msra.mxu0 %v1559
    %1625 = vmatprep.subr.bf16.mxu0 %v1562
    %1626 = vmatpush1.bf16.msra.mxu0 %v1561
    %1627 = vmatprep.mubr.bf16.mxu0 %v1428
    %1628 = vmatmul.mubr.bf16.gmra.mrb[0].mxu0 %v1427
    %v1629 = vpop.f32.mrb[0].mxu0
    %v1630 = vadd.f32 %v1397, %v1629
    %v1631 = vpop.f32.mrb[0].mxu0
    %v1632 = vadd.f32 %v1399, %v1631
    %v1633 = vpop.f32.mrb[0].mxu0
    %v1634 = vadd.f32 %v1401, %v1633
    %v1635 = vpop.f32.mrb[0].mxu0
    %v1636 = vadd.f32 %v1403, %v1635
    %1637 = vmatprep.mubr.bf16.mxu0 %v1430
    %1638 = vmatmul.mubr.bf16.gmra.mrb[0].mxu0 %v1429
    %v1639 = vpop.f32.mrb[0].mxu0
    %v1640 = vadd.f32 %v1407, %v1639
    %v1641 = vpop.f32.mrb[0].mxu0
    %v1642 = vadd.f32 %v1409, %v1641
    %v1643 = vpop.f32.mrb[0].mxu0
    %v1644 = vadd.f32 %v1411, %v1643
    %v1645 = vpop.f32.mrb[0].mxu0
    %v1646 = vadd.f32 %v1413, %v1645
    %1647 = vdwg.mxu0
    %v1648 = vld [vmem:[#allocation2] sm:$0xee]
    %v1649 = vld [vmem:[#allocation2 + $0x18] sm:$0xee]
    %v1654 = vrot.slane %v1648, 5
    %v1655 = vrot.slane %v1654, 4
    %v1656 = vrot.slane %v1068, 5
    %v1657 = vsel %vm641, %v1655, %v1656
    %v1658 = vrot.slane %v1656, 4
    %v1659 = vrot.slane %v1103, 5
    %v1660 = vsel %vm641, %v1658, %v1659
    %v1661 = vrot.slane %v1649, 5
    %v1662 = vrot.slane %v1661, 4
    %v1663 = vrot.slane %v1070, 5
    %v1664 = vsel %vm641, %v1662, %v1663
    %v1665 = vrot.slane %v1663, 4
    %v1666 = vrot.slane %v1104, 5
    %v1667 = vsel %vm641, %v1665, %v1666
    %s1668 = scalar_lea.vmem [#allocation6], 512
    %v1669 = vld [vmem:[%s1668] sm:$0xff]
    %v1670 = vld [vmem:[%s1668 + $0x8] sm:$0xff]
    %v1671 = vld [vmem:[%s1668 + $0x10] sm:$0xff]
    %v1672 = vld [vmem:[%s1668 + $0x18] sm:$0xff]
    %v1673 = vld [vmem:[%s1668 + $0x20] sm:$0xff]
    %v1674 = vld [vmem:[%s1668 + $0x28] sm:$0xff]
    %v1675 = vld [vmem:[%s1668 + $0x30] sm:$0xff]
    %v1676 = vld [vmem:[%s1668 + $0x38] sm:$0xff]
    %v1677 = vld [vmem:[%s1668 + $0x40] sm:$0xff]
    %v1678 = vld [vmem:[%s1668 + $0x48] sm:$0xff]
    %v1679 = vld [vmem:[%s1668 + $0x50] sm:$0xff]
    %v1680 = vld [vmem:[%s1668 + $0x58] sm:$0xff]
    %v1681 = vld [vmem:[%s1668 + $0x60] sm:$0xff]
    %v1682 = vld [vmem:[%s1668 + $0x68] sm:$0xff]
    %v1683 = vld [vmem:[%s1668 + $0x70] sm:$0xff]
    %v1684 = vld [vmem:[%s1668 + $0x78] sm:$0xff]
    %v1685 = vld [vmem:[%s1668 + $0x80] sm:$0xff]
    %v1686 = vld [vmem:[%s1668 + $0x88] sm:$0xff]
    %v1687 = vld [vmem:[%s1668 + $0x90] sm:$0xff]
    %v1688 = vld [vmem:[%s1668 + $0x98] sm:$0xff]
    %v1689 = vld [vmem:[%s1668 + $0xa0] sm:$0xff]
    %v1690 = vld [vmem:[%s1668 + $0xa8] sm:$0xff]
    %v1691 = vld [vmem:[%s1668 + $0xb0] sm:$0xff]
    %v1692 = vld [vmem:[%s1668 + $0xb8] sm:$0xff]
    %v1693 = vld [vmem:[%s1668 + $0xc0] sm:$0xff]
    %v1694 = vld [vmem:[%s1668 + $0xc8] sm:$0xff]
    %v1695 = vld [vmem:[%s1668 + $0xd0] sm:$0xff]
    %v1696 = vld [vmem:[%s1668 + $0xd8] sm:$0xff]
    %v1697 = vld [vmem:[%s1668 + $0xe0] sm:$0xff]
    %v1698 = vld [vmem:[%s1668 + $0xe8] sm:$0xff]
    %v1699 = vld [vmem:[%s1668 + $0xf0] sm:$0xff]
    %v1700 = vld [vmem:[%s1668 + $0xf8] sm:$0xff]
    %v1701 = vunpack.c.l.b16 %v1657
    %v1702 = vunpack.c.h.b16 %v1657
    %v1703 = vunpack.c.l.b16 %v1660
    %v1704 = vunpack.c.h.b16 %v1660
    %v1705 = vunpack.c.l.b16 %v1664
    %v1706 = vunpack.c.h.b16 %v1664
    %v1707 = vunpack.c.l.b16 %v1667
    %v1708 = vunpack.c.h.b16 %v1667
    %v1709 = vpack.c.b16 %v1703, %v1701
    %v1710 = vpack.c.b16 %v1704, %v1702
    %v1711 = vpack.c.b16 %v1707, %v1705
    %v1712 = vpack.c.b16 %v1708, %v1706
    %v1749 = vunpack.c.l.b16 %v1669
    %v1750 = vunpack.c.h.b16 %v1669
    %v1751 = vunpack.c.l.b16 %v1670
    %v1752 = vunpack.c.h.b16 %v1670
    %v1753 = vunpack.c.l.b16 %v1671
    %v1754 = vunpack.c.h.b16 %v1671
    %v1755 = vunpack.c.l.b16 %v1672
    %v1756 = vunpack.c.h.b16 %v1672
    %v1757 = vunpack.c.l.b16 %v1673
    %v1758 = vunpack.c.h.b16 %v1673
    %v1759 = vunpack.c.l.b16 %v1674
    %v1760 = vunpack.c.h.b16 %v1674
    %v1761 = vunpack.c.l.b16 %v1675
    %v1762 = vunpack.c.h.b16 %v1675
    %v1763 = vunpack.c.l.b16 %v1676
    %v1764 = vunpack.c.h.b16 %v1676
    %v1765 = vunpack.c.l.b16 %v1677
    %v1766 = vunpack.c.h.b16 %v1677
    %v1767 = vunpack.c.l.b16 %v1678
    %v1768 = vunpack.c.h.b16 %v1678
    %v1769 = vunpack.c.l.b16 %v1679
    %v1770 = vunpack.c.h.b16 %v1679
    %v1771 = vunpack.c.l.b16 %v1680
    %v1772 = vunpack.c.h.b16 %v1680
    %v1773 = vunpack.c.l.b16 %v1681
    %v1774 = vunpack.c.h.b16 %v1681
    %v1775 = vunpack.c.l.b16 %v1682
    %v1776 = vunpack.c.h.b16 %v1682
    %v1777 = vunpack.c.l.b16 %v1683
    %v1778 = vunpack.c.h.b16 %v1683
    %v1779 = vunpack.c.l.b16 %v1684
    %v1780 = vunpack.c.h.b16 %v1684
    %v1781 = vunpack.c.l.b16 %v1685
    %v1782 = vunpack.c.h.b16 %v1685
    %v1783 = vunpack.c.l.b16 %v1686
    %v1784 = vunpack.c.h.b16 %v1686
    %v1785 = vunpack.c.l.b16 %v1687
    %v1786 = vunpack.c.h.b16 %v1687
    %v1787 = vunpack.c.l.b16 %v1688
    %v1788 = vunpack.c.h.b16 %v1688
    %v1789 = vunpack.c.l.b16 %v1689
    %v1790 = vunpack.c.h.b16 %v1689
    %v1791 = vunpack.c.l.b16 %v1690
    %v1792 = vunpack.c.h.b16 %v1690
    %v1793 = vunpack.c.l.b16 %v1691
    %v1794 = vunpack.c.h.b16 %v1691
    %v1795 = vunpack.c.l.b16 %v1692
    %v1796 = vunpack.c.h.b16 %v1692
    %v1797 = vunpack.c.l.b16 %v1693
    %v1798 = vunpack.c.h.b16 %v1693
    %v1799 = vunpack.c.l.b16 %v1694
    %v1800 = vunpack.c.h.b16 %v1694
    %v1801 = vunpack.c.l.b16 %v1695
    %v1802 = vunpack.c.h.b16 %v1695
    %v1803 = vunpack.c.l.b16 %v1696
    %v1804 = vunpack.c.h.b16 %v1696
    %v1805 = vunpack.c.l.b16 %v1697
    %v1806 = vunpack.c.h.b16 %v1697
    %v1807 = vunpack.c.l.b16 %v1698
    %v1808 = vunpack.c.h.b16 %v1698
    %v1809 = vunpack.c.l.b16 %v1699
    %v1810 = vunpack.c.h.b16 %v1699
    %v1811 = vunpack.c.l.b16 %v1700
    %v1812 = vunpack.c.h.b16 %v1700
    %v1813 = vpack.c.b16 %v1751, %v1749
    %v1814 = vpack.c.b16 %v1752, %v1750
    %v1815 = vpack.c.b16 %v1755, %v1753
    %v1816 = vpack.c.b16 %v1756, %v1754
    %v1817 = vpack.c.b16 %v1759, %v1757
    %v1818 = vpack.c.b16 %v1760, %v1758
    %v1819 = vpack.c.b16 %v1763, %v1761
    %v1820 = vpack.c.b16 %v1764, %v1762
    %v1821 = vpack.c.b16 %v1767, %v1765
    %v1822 = vpack.c.b16 %v1768, %v1766
    %v1823 = vpack.c.b16 %v1771, %v1769
    %v1824 = vpack.c.b16 %v1772, %v1770
    %v1825 = vpack.c.b16 %v1775, %v1773
    %v1826 = vpack.c.b16 %v1776, %v1774
    %v1827 = vpack.c.b16 %v1779, %v1777
    %v1828 = vpack.c.b16 %v1780, %v1778
    %v1829 = vpack.c.b16 %v1783, %v1781
    %v1830 = vpack.c.b16 %v1784, %v1782
    %v1831 = vpack.c.b16 %v1787, %v1785
    %v1832 = vpack.c.b16 %v1788, %v1786
    %v1833 = vpack.c.b16 %v1791, %v1789
    %v1834 = vpack.c.b16 %v1792, %v1790
    %v1835 = vpack.c.b16 %v1795, %v1793
    %v1836 = vpack.c.b16 %v1796, %v1794
    %v1837 = vpack.c.b16 %v1799, %v1797
    %v1838 = vpack.c.b16 %v1800, %v1798
    %v1839 = vpack.c.b16 %v1803, %v1801
    %v1840 = vpack.c.b16 %v1804, %v1802
    %v1841 = vpack.c.b16 %v1807, %v1805
    %v1842 = vpack.c.b16 %v1808, %v1806
    %v1843 = vpack.c.b16 %v1811, %v1809
    %v1844 = vpack.c.b16 %v1812, %v1810
    %1877 = vmatprep.subr.bf16.mxu0 %v1814
    %1878 = vmatpush1.bf16.msra.mxu0 %v1813
    %1879 = vmatprep.subr.bf16.mxu0 %v1816
    %1880 = vmatpush1.bf16.msra.mxu0 %v1815
    %1881 = vmatprep.subr.bf16.mxu0 %v1818
    %1882 = vmatpush1.bf16.msra.mxu0 %v1817
    %1883 = vmatprep.subr.bf16.mxu0 %v1820
    %1884 = vmatpush1.bf16.msra.mxu0 %v1819
    %1885 = vmatprep.subr.bf16.mxu0 %v1822
    %1886 = vmatpush1.bf16.msra.mxu0 %v1821
    %1887 = vmatprep.subr.bf16.mxu0 %v1824
    %1888 = vmatpush1.bf16.msra.mxu0 %v1823
    %1889 = vmatprep.subr.bf16.mxu0 %v1826
    %1890 = vmatpush1.bf16.msra.mxu0 %v1825
    %1891 = vmatprep.subr.bf16.mxu0 %v1828
    %1892 = vmatpush1.bf16.msra.mxu0 %v1827
    %1893 = vmatprep.subr.bf16.mxu0 %v1830
    %1894 = vmatpush1.bf16.msra.mxu0 %v1829
    %1895 = vmatprep.subr.bf16.mxu0 %v1832
    %1896 = vmatpush1.bf16.msra.mxu0 %v1831
    %1897 = vmatprep.subr.bf16.mxu0 %v1834
    %1898 = vmatpush1.bf16.msra.mxu0 %v1833
    %1899 = vmatprep.subr.bf16.mxu0 %v1836
    %1900 = vmatpush1.bf16.msra.mxu0 %v1835
    %1901 = vmatprep.subr.bf16.mxu0 %v1838
    %1902 = vmatpush1.bf16.msra.mxu0 %v1837
    %1903 = vmatprep.subr.bf16.mxu0 %v1840
    %1904 = vmatpush1.bf16.msra.mxu0 %v1839
    %1905 = vmatprep.subr.bf16.mxu0 %v1842
    %1906 = vmatpush1.bf16.msra.mxu0 %v1841
    %1907 = vmatprep.subr.bf16.mxu0 %v1844
    %1908 = vmatpush1.bf16.msra.mxu0 %v1843
    %1909 = vmatprep.mubr.bf16.mxu0 %v1710
    %1910 = vmatmul.mubr.bf16.gmra.mrb[0].mxu0 %v1709
    %v1911 = vpop.f32.mrb[0].mxu0
    %v1912 = vadd.f32 0.0, %v1911
    %v1913 = vpop.f32.mrb[0].mxu0
    %v1914 = vadd.f32 0.0, %v1913
    %v1915 = vpop.f32.mrb[0].mxu0
    %v1916 = vadd.f32 0.0, %v1915
    %v1917 = vpop.f32.mrb[0].mxu0
    %v1918 = vadd.f32 0.0, %v1917
    %1919 = vmatprep.mubr.bf16.mxu0 %v1712
    %1920 = vmatmul.mubr.bf16.gmra.mrb[0].mxu0 %v1711
    %v1921 = vpop.f32.mrb[0].mxu0
    %v1922 = vadd.f32 0.0, %v1921
    %v1923 = vpop.f32.mrb[0].mxu0
    %v1924 = vadd.f32 0.0, %v1923
    %v1925 = vpop.f32.mrb[0].mxu0
    %v1926 = vadd.f32 0.0, %v1925
    %v1927 = vpop.f32.mrb[0].mxu0
    %v1928 = vadd.f32 0.0, %v1927
    %1929 = vdwg.mxu0
    %v1930 = vadd.f32 %v1630, %v1912
    %v1931 = vadd.f32 %v1632, %v1914
    %v1932 = vadd.f32 %v1634, %v1916
    %v1933 = vadd.f32 %v1636, %v1918
    %v1934 = vadd.f32 %v1640, %v1922
    %v1935 = vadd.f32 %v1642, %v1924
    %v1936 = vadd.f32 %v1644, %v1926
    %v1937 = vadd.f32 %v1646, %v1928
    %v1938 = vld [vmem:[%s4] sm:$0x3]
    %v1940 = vlaneseq
    %v1941 = vshrl.u32 %v1940, 7
    %v1942 = vsub.s32 0, %v1941
    %v1943 = vrot.slane %v1938, %v1942
    %v1944 = vlaneseq
    %v1945 = vshrl.u32 %v1944, 7
    %v1946 = vsub.s32 1, %v1945
    %v1947 = vrot.slane %v1938, %v1946
    %v1950 = vadd.f32 %v1930, %v1943
    %v1951 = vadd.f32 %v1931, %v1947
    %v1952 = vadd.f32 %v1932, %v1943
    %v1953 = vadd.f32 %v1933, %v1947
    %v1954 = vadd.f32 %v1934, %v1943
    %v1955 = vadd.f32 %v1935, %v1947
    %v1956 = vadd.f32 %v1936, %v1943
    %v1957 = vadd.f32 %v1937, %v1947
    %v1958 = vmax.f32 %v1950, 0.0
    %v1959 = vmax.f32 %v1951, 0.0
    %v1960 = vmax.f32 %v1952, 0.0
    %v1961 = vmax.f32 %v1953, 0.0
    %v1962 = vmax.f32 %v1954, 0.0
    %v1963 = vmax.f32 %v1955, 0.0
    %v1964 = vmax.f32 %v1956, 0.0
    %v1965 = vmax.f32 %v1957, 0.0
    %1966 = vst [vmem:[#allocation8] sm:$0xff] %v1958
    %1967 = vst [vmem:[#allocation8 + $0x8] sm:$0xff] %v1959
    %1968 = vst [vmem:[#allocation8 + $0x10] sm:$0xff] %v1960
    %1969 = vst [vmem:[#allocation8 + $0x18] sm:$0xff] %v1961
    %1970 = vst [vmem:[#allocation8 + $0x20] sm:$0xff] %v1962
    %1971 = vst [vmem:[#allocation8 + $0x28] sm:$0xff] %v1963
    %1972 = vst [vmem:[#allocation8 + $0x30] sm:$0xff] %v1964
    %1973 = vst [vmem:[#allocation8 + $0x38] sm:$0xff] %v1965
    // Predicated region
    $region30: #{tpu_custom_call.1} parent=1 // pred_check
      _
    $region31: #{tpu_custom_call.1} parent=1 // pred_check_branch
      %1975 = sbr.rel (0) target = $region33
    $region32: #{tpu_custom_call.1} parent=1 // pred_region
      %s1977 = ssub.s32 1024, 1024
      %1978 = vsyncadd [#allocation5], %s1977
      %s1979 = sshll.u32 [#allocation8], 4
      %s1980 = int_to_ptr.vmem [resolvable:$true] %s1979
      %1985 = dma.vmem_to_hbm [thread:$0]  %s1980, 1024, %s5, [#allocation5], 256, 256, 16
    $region33: #{tpu_custom_call.1} parent=1 // pred_fallthru
      _
    // Predicated region
    $region34: #{tpu_custom_call.1} parent=1 // pred_check
      _
    $region35: #{tpu_custom_call.1} parent=1 // pred_check_branch
      %1987 = sbr.rel (0) target = $region37
    $region36: #{tpu_custom_call.1} parent=1 // pred_region
      %1988 = dma.done [#allocation5], 1024
    $region37: #{tpu_custom_call.1} parent=1 // pred_fallthru
      _
    %1989 = vsyncpa [#allocation4], 1
    %1990 = vsyncpa [#allocation7], 1
    %1991 = vsyncpa [#allocation5], 1

</llo_original>
